<compile_context>
chip_gen: v7x
topology: tpu7x:2x2x1
jax: 0.10.0
libtpu: 0.0.40
codegen_flags: <defaults>
</compile_context>

<pallas_src>
import jax
import jax.numpy as jnp
from jax.experimental import pallas as pl
from jax.experimental.pallas import tpu as pltpu

# Module-level constant in the original file (not shown in the snippet); 3 is the
# typical odd choice, matching 'same' padding of (K-1)//2 / (K-1-(K-1)//2).
FILTER_SIZE = 3


def _shift_rows(h, off):
    """Return s with s[t] = h[t + off] along axis 0, zero padded (static off)."""
    if off == 0:
        return h
    T, C = h.shape
    z = jnp.zeros((abs(off), C), h.dtype)
    if off > 0:
        return jnp.concatenate([h[off:, :], z], axis=0)
    return jnp.concatenate([z, h[:off, :]], axis=0)


def _upconv1d_same(h, w_ref, b_ref):
    """Fused nearest-2x upsample + Conv1d (stride 1, 'same', cross-correlation).

    h: (T, Cin) time-major, channels on lanes.
    w_ref: (K, Cin, Cout)   (== torch weight (Cout, Cin, K) transposed).
    b_ref: (1, Cout).
    Returns (y_even, y_odd), each (T, Cout), where
        y_even[t] = conv(up2(h))[2t],   y_odd[t] = conv(up2(h))[2t + 1].
    """
    T, Cin = h.shape
    K = w_ref.shape[0]
    Cout = w_ref.shape[2]
    pad_l = (K - 1) // 2

    phases = []
    for p in range(2):                               # output phase (even / odd)
        # Group filter taps that read the same pre-upsample row offset:
        # up2(h)[2t + p + k - pad_l] == h[t + (p + k - pad_l) // 2]  (floor div).
        groups = {}
        for k in range(K):                           # static, K small
            off = (p + k - pad_l) // 2               # Python floor division
            groups.setdefault(off, []).append(k)

        acc = jnp.zeros((T, Cout), jnp.float32)
        for off, ks in sorted(groups.items()):
            w = w_ref[ks[0]].astype(jnp.float32)
            for k in ks[1:]:
                w = w + w_ref[k].astype(jnp.float32)
            acc = acc + jnp.dot(_shift_rows(h, off), w,
                                preferred_element_type=jnp.float32)
        phases.append(acc + b_ref[...].astype(jnp.float32))
    return phases[0], phases[1]


def _interleave2(y_even, y_odd):
    """out[2t] = y_even[t]; out[2t+1] = y_odd[t] via exact 0/1 selection matmuls."""
    T, _ = y_even.shape
    s = jax.lax.broadcasted_iota(jnp.int32, (2 * T, T), 0)       # output row
    t2 = 2 * jax.lax.broadcasted_iota(jnp.int32, (2 * T, T), 1)  # 2 * source row
    d = s - t2
    sel_e = jnp.where(d == 0, 1.0, 0.0)
    sel_o = jnp.where(d == 1, 1.0, 0.0)
    return (jnp.dot(sel_e, y_even, preferred_element_type=jnp.float32)
            + jnp.dot(sel_o, y_odd, preferred_element_type=jnp.float32))


def _decoder_kernel(x_ref,
                    w1_ref, b1_ref,     # Conv1d 256 -> 128
                    w2_ref, b2_ref,     # Conv1d 128 ->  64
                    w3_ref, b3_ref,     # Conv1d  64 ->  63
                    out_ref):
    h = jnp.tanh(x_ref[0].astype(jnp.float32))                    # (T, 256)

    ye, yo = _upconv1d_same(h, w1_ref, b1_ref)                    # 2 x (T, 128)
    ye = jnp.tanh(jnp.maximum(ye, 0.0))                           # relu -> tanh
    yo = jnp.tanh(jnp.maximum(yo, 0.0))
    h = _interleave2(ye, yo)                                      # (2T, 128)

    ye, yo = _upconv1d_same(h, w2_ref, b2_ref)                    # 2 x (2T, 64)
    ye = jnp.tanh(jnp.maximum(ye, 0.0))
    yo = jnp.tanh(jnp.maximum(yo, 0.0))
    h = _interleave2(ye, yo)                                      # (4T, 64)

    ye, yo = _upconv1d_same(h, w3_ref, b3_ref)                    # 2 x (4T, 63)
    y = _interleave2(jnp.tanh(ye), jnp.tanh(yo))                  # (8T, 63)
    out_ref[0] = y.astype(out_ref.dtype)


@jax.jit
def decoder_forward(x, params):
    """x: (B, T, 256). Returns (B, 8*T, 63) float32 (matches Decoder.forward)."""
    B, T, Cin = x.shape
    w1, b1 = params["w1"], params["b1"]
    w2, b2 = params["w2"], params["b2"]
    w3, b3 = params["w3"], params["b3"]
    K = w1.shape[0]
    T_out = 8 * T
    C_out = w3.shape[2]

    def resident(arr):
        # Whole weight / bias resident in VMEM every grid step (constant index map).
        if arr.ndim == 3:
            return pl.BlockSpec(arr.shape, lambda i: (0, 0, 0))
        return pl.BlockSpec(arr.shape, lambda i: (0, 0))

    # Advisory cost hint so XLA schedules/overlaps the custom call sensibly.
    # Fused up+conv: (K+1) grouped-tap matmuls per stage at the pre-upsample length.
    mac_conv = (K + 1) * (T * 256 * 128 + 2 * T * 128 * 64 + 4 * T * 64 * C_out)
    mac_sel = 2 * (2 * T * T * 128 + 4 * T * 2 * T * 64 + 8 * T * 4 * T * C_out)
    transcendentals = B * T * (256 + 2 * 128 + 4 * 64 + 8 * C_out)
    bytes_accessed = 4 * (x.size + B * T_out * C_out
                          + sum(p.size for p in (w1, b1, w2, b2, w3, b3)))

    return pl.pallas_call(
        _decoder_kernel,
        out_shape=jax.ShapeDtypeStruct((B, T_out, C_out), jnp.float32),
        grid_spec=pl.GridSpec(
            grid=(B,),                       # >= 2 steps => both v7x TensorCores busy
            in_specs=[
                pl.BlockSpec((1, T, Cin), lambda i: (i, 0, 0)),   # one sample / step
                resident(w1), resident(b1),
                resident(w2), resident(b2),
                resident(w3), resident(b3),
            ],
            out_specs=pl.BlockSpec((1, T_out, C_out), lambda i: (i, 0, 0)),
        ),
        compiler_params=pltpu.CompilerParams(
            dimension_semantics=("parallel",)),
        cost_estimate=pl.CostEstimate(
            flops=2 * B * (mac_conv + mac_sel),
            transcendentals=transcendentals,
            bytes_accessed=bytes_accessed),
    )(x, w1, b1, w2, b2, w3, b3)


def init_params(key, filter_size=FILTER_SIZE):
    """torch nn.Conv1d default init (U(+-1/sqrt(Cin*K))); weights stored (K, Cin, Cout)."""
    def conv(k, cin, cout):
        kw, kb = jax.random.split(k)
        bound = 1.0 / float((cin * filter_size) ** 0.5)
        w = jax.random.uniform(kw, (filter_size, cin, cout), jnp.float32, -bound, bound)
        b = jax.random.uniform(kb, (1, cout), jnp.float32, -bound, bound)
        return w, b

    k1, k2, k3 = jax.random.split(key, 3)
    w1, b1 = conv(k1, 256, 128)
    w2, b2 = conv(k2, 128, 64)
    w3, b3 = conv(k3, 64, 63)
    return {"w1": w1, "b1": b1, "w2": w2, "b2": b2, "w3": w3, "b3": b3}


def _reference_forward(x, params):
    """Pure-JAX (XLA) reference mirroring PyTorch Decoder.forward."""
    def conv1d_same(h, w, b):                 # h: (B, T, Cin); w: (K, Cin, Cout)
        K = w.shape[0]
        pad_l = (K - 1) // 2
        hp = jnp.pad(h, ((0, 0), (pad_l, K - 1 - pad_l), (0, 0)))
        T = h.shape[1]
        out = sum(jnp.einsum("btc,cd->btd", hp[:, k:k + T, :], w[k]) for k in range(K))
        return out + b

    def up2(h):                               # nearest, scale 2 along time
        return jnp.repeat(h, 2, axis=1)

    h = jnp.tanh(x)
    h = up2(h)
    h = jnp.maximum(conv1d_same(h, params["w1"], params["b1"]), 0.0)
    h = jnp.tanh(h)
    h = up2(h)
    h = jnp.maximum(conv1d_same(h, params["w2"], params["b2"]), 0.0)
    h = jnp.tanh(h)
    h = up2(h)
    return jnp.tanh(conv1d_same(h, params["w3"], params["b3"]))


if __name__ == "__main__":
    B, T = 2, 8                               # input (B, T, 256) -> output (B, 64, 63)
    key = jax.random.PRNGKey(0)
    kx, kp = jax.random.split(key)
    x = jax.random.normal(kx, (B, T, 256), jnp.float32)
    params = init_params(kp)

    out = jax.block_until_ready(decoder_forward(x, params))

    ref = _reference_forward(x, params)
    assert out.shape == (B, 8 * T, 63), out.shape
    assert jnp.allclose(out, ref, atol=5e-3, rtol=5e-3), \
        float(jnp.max(jnp.abs(out - ref)))
    print("KERNEL_OK")
</pallas_src>

<mosaic_0001>
module attributes {stable_mosaic.version = 11 : i64} {
  func.func @_decoder_kernel(%arg0: i32, %arg1: memref<1x8x256xf32, #tpu.memory_space<vmem>>, %arg2: memref<3x256x128xf32, #tpu.memory_space<vmem>>, %arg3: memref<1x128xf32, #tpu.memory_space<vmem>>, %arg4: memref<3x128x64xf32, #tpu.memory_space<vmem>>, %arg5: memref<1x64xf32, #tpu.memory_space<vmem>>, %arg6: memref<3x64x63xf32, #tpu.memory_space<vmem>>, %arg7: memref<1x63xf32, #tpu.memory_space<vmem>>, %arg8: memref<1x64x63xf32, #tpu.memory_space<vmem>>) attributes {dimension_semantics = [#tpu.dimension_semantics<parallel>], iteration_bounds = array<i64: 2>, scalar_prefetch = 0 : i64, scratch_operands = 0 : i64, tpu.core_type = #tpu.core_type<tc>, window_params = [{transform_indices = @transform_0, window_bounds = array<i64: 1, 8, 256>}, {pipeline_mode = #tpu.pipeline_mode<synchronous>, transform_indices = @transform_1, window_bounds = array<i64: 3, 256, 128>}, {pipeline_mode = #tpu.pipeline_mode<synchronous>, transform_indices = @transform_2, window_bounds = array<i64: 1, 128>}, {pipeline_mode = #tpu.pipeline_mode<synchronous>, transform_indices = @transform_3, window_bounds = array<i64: 3, 128, 64>}, {pipeline_mode = #tpu.pipeline_mode<synchronous>, transform_indices = @transform_4, window_bounds = array<i64: 1, 64>}, {pipeline_mode = #tpu.pipeline_mode<synchronous>, transform_indices = @transform_5, window_bounds = array<i64: 3, 64, 63>}, {pipeline_mode = #tpu.pipeline_mode<synchronous>, transform_indices = @transform_6, window_bounds = array<i64: 1, 63>}, {transform_indices = @transform_7, window_bounds = array<i64: 1, 64, 63>}]} {
    %c0 = arith.constant 0 : index
    %c0_0 = arith.constant 0 : index
    %c0_1 = arith.constant 0 : index
    %0 = vector.load %arg1[%c0, %c0_0, %c0_1] : memref<1x8x256xf32, #tpu.memory_space<vmem>>, vector<1x8x256xf32>
    %1 = vector.shape_cast %0 : vector<1x8x256xf32> to vector<8x256xf32>
    %2 = math.tanh %1 : vector<8x256xf32>
    %cst = arith.constant 0.000000e+00 : f32
    %3 = vector.broadcast %cst : f32 to vector<8x128xf32>
    %c0_2 = arith.constant 0 : index
    %c0_3 = arith.constant 0 : index
    %c0_4 = arith.constant 0 : index
    %4 = vector.load %arg2[%c0_2, %c0_3, %c0_4] : memref<3x256x128xf32, #tpu.memory_space<vmem>>, vector<1x256x128xf32>
    %5 = vector.shape_cast %4 : vector<1x256x128xf32> to vector<256x128xf32>
    %cst_5 = arith.constant 0.000000e+00 : f32
    %6 = vector.broadcast %cst_5 : f32 to vector<1x256xf32>
    %7 = vector.extract_strided_slice %2 {offsets = [0, 0], sizes = [7, 256], strides = [1, 1]} : vector<8x256xf32> to vector<7x256xf32>
    %8 = tpu.concatenate %6, %7 in 0 : vector<1x256xf32>, vector<7x256xf32> -> vector<8x256xf32>
    %cst_6 = arith.constant dense<0.000000e+00> : vector<8x128xf32>
    %9 = tpu.matmul %8, %5, %cst_6 {dimension_numbers = #tpu.dot_dimension_numbers<[1], [0], [0], [1], [0, 0, 1, 1], [], []>} : vector<8x256xf32>, vector<256x128xf32>, vector<8x128xf32> -> vector<8x128xf32>
    %10 = arith.addf %3, %9 : vector<8x128xf32>
    %c1 = arith.constant 1 : index
    %c0_7 = arith.constant 0 : index
    %c0_8 = arith.constant 0 : index
    %11 = vector.load %arg2[%c1, %c0_7, %c0_8] : memref<3x256x128xf32, #tpu.memory_space<vmem>>, vector<1x256x128xf32>
    %12 = vector.shape_cast %11 : vector<1x256x128xf32> to vector<256x128xf32>
    %c2 = arith.constant 2 : index
    %c0_9 = arith.constant 0 : index
    %c0_10 = arith.constant 0 : index
    %13 = vector.load %arg2[%c2, %c0_9, %c0_10] : memref<3x256x128xf32, #tpu.memory_space<vmem>>, vector<1x256x128xf32>
    %14 = vector.shape_cast %13 : vector<1x256x128xf32> to vector<256x128xf32>
    %15 = arith.addf %12, %14 : vector<256x128xf32>
    %cst_11 = arith.constant dense<0.000000e+00> : vector<8x128xf32>
    %16 = tpu.matmul %2, %15, %cst_11 {dimension_numbers = #tpu.dot_dimension_numbers<[1], [0], [0], [1], [0, 0, 1, 1], [], []>} : vector<8x256xf32>, vector<256x128xf32>, vector<8x128xf32> -> vector<8x128xf32>
    %17 = arith.addf %10, %16 : vector<8x128xf32>
    %c0_12 = arith.constant 0 : index
    %c0_13 = arith.constant 0 : index
    %18 = vector.load %arg3[%c0_12, %c0_13] : memref<1x128xf32, #tpu.memory_space<vmem>>, vector<1x128xf32>
    %19 = vector.broadcast %18 : vector<1x128xf32> to vector<8x128xf32>
    %20 = arith.addf %17, %19 : vector<8x128xf32>
    %cst_14 = arith.constant 0.000000e+00 : f32
    %21 = vector.broadcast %cst_14 : f32 to vector<8x128xf32>
    %c0_15 = arith.constant 0 : index
    %c0_16 = arith.constant 0 : index
    %c0_17 = arith.constant 0 : index
    %22 = vector.load %arg2[%c0_15, %c0_16, %c0_17] : memref<3x256x128xf32, #tpu.memory_space<vmem>>, vector<1x256x128xf32>
    %23 = vector.shape_cast %22 : vector<1x256x128xf32> to vector<256x128xf32>
    %c1_18 = arith.constant 1 : index
    %c0_19 = arith.constant 0 : index
    %c0_20 = arith.constant 0 : index
    %24 = vector.load %arg2[%c1_18, %c0_19, %c0_20] : memref<3x256x128xf32, #tpu.memory_space<vmem>>, vector<1x256x128xf32>
    %25 = vector.shape_cast %24 : vector<1x256x128xf32> to vector<256x128xf32>
    %26 = arith.addf %23, %25 : vector<256x128xf32>
    %cst_21 = arith.constant dense<0.000000e+00> : vector<8x128xf32>
    %27 = tpu.matmul %2, %26, %cst_21 {dimension_numbers = #tpu.dot_dimension_numbers<[1], [0], [0], [1], [0, 0, 1, 1], [], []>} : vector<8x256xf32>, vector<256x128xf32>, vector<8x128xf32> -> vector<8x128xf32>
    %28 = arith.addf %21, %27 : vector<8x128xf32>
    %c2_22 = arith.constant 2 : index
    %c0_23 = arith.constant 0 : index
    %c0_24 = arith.constant 0 : index
    %29 = vector.load %arg2[%c2_22, %c0_23, %c0_24] : memref<3x256x128xf32, #tpu.memory_space<vmem>>, vector<1x256x128xf32>
    %30 = vector.shape_cast %29 : vector<1x256x128xf32> to vector<256x128xf32>
    %cst_25 = arith.constant 0.000000e+00 : f32
    %31 = vector.broadcast %cst_25 : f32 to vector<1x256xf32>
    %32 = vector.extract_strided_slice %2 {offsets = [1, 0], sizes = [7, 256], strides = [1, 1]} : vector<8x256xf32> to vector<7x256xf32>
    %33 = tpu.concatenate %32, %31 in 0 : vector<7x256xf32>, vector<1x256xf32> -> vector<8x256xf32>
    %cst_26 = arith.constant dense<0.000000e+00> : vector<8x128xf32>
    %34 = tpu.matmul %33, %30, %cst_26 {dimension_numbers = #tpu.dot_dimension_numbers<[1], [0], [0], [1], [0, 0, 1, 1], [], []>} : vector<8x256xf32>, vector<256x128xf32>, vector<8x128xf32> -> vector<8x128xf32>
    %35 = arith.addf %28, %34 : vector<8x128xf32>
    %c0_27 = arith.constant 0 : index
    %c0_28 = arith.constant 0 : index
    %36 = vector.load %arg3[%c0_27, %c0_28] : memref<1x128xf32, #tpu.memory_space<vmem>>, vector<1x128xf32>
    %37 = vector.broadcast %36 : vector<1x128xf32> to vector<8x128xf32>
    %38 = arith.addf %35, %37 : vector<8x128xf32>
    %cst_29 = arith.constant 0.000000e+00 : f32
    %39 = vector.broadcast %cst_29 : f32 to vector<8x128xf32>
    %40 = arith.maximumf %20, %39 : vector<8x128xf32>
    %41 = math.tanh %40 : vector<8x128xf32>
    %cst_30 = arith.constant 0.000000e+00 : f32
    %42 = vector.broadcast %cst_30 : f32 to vector<8x128xf32>
    %43 = arith.maximumf %38, %42 : vector<8x128xf32>
    %44 = math.tanh %43 : vector<8x128xf32>
    %45 = tpu.iota {dimensions = array<i32: 0>} : vector<16x8xi32>
    %46 = tpu.iota {dimensions = array<i32: 1>} : vector<16x8xi32>
    %c2_i32 = arith.constant 2 : i32
    %47 = vector.broadcast %c2_i32 : i32 to vector<16x8xi32>
    %48 = arith.muli %47, %46 : vector<16x8xi32>
    %49 = arith.subi %45, %48 : vector<16x8xi32>
    %c0_i32 = arith.constant 0 : i32
    %50 = vector.broadcast %c0_i32 : i32 to vector<16x8xi32>
    %51 = arith.cmpi eq, %49, %50 : vector<16x8xi32>
    %cst_31 = arith.constant 1.000000e+00 : f32
    %cst_32 = arith.constant 0.000000e+00 : f32
    %52 = vector.broadcast %cst_31 : f32 to vector<16x8xf32>
    %53 = vector.broadcast %cst_32 : f32 to vector<16x8xf32>
    %54 = arith.select %51, %52, %53 : vector<16x8xi1>, vector<16x8xf32>
    %c1_i32 = arith.constant 1 : i32
    %55 = vector.broadcast %c1_i32 : i32 to vector<16x8xi32>
    %56 = arith.cmpi eq, %49, %55 : vector<16x8xi32>
    %cst_33 = arith.constant 1.000000e+00 : f32
    %cst_34 = arith.constant 0.000000e+00 : f32
    %57 = vector.broadcast %cst_33 : f32 to vector<16x8xf32>
    %58 = vector.broadcast %cst_34 : f32 to vector<16x8xf32>
    %59 = arith.select %56, %57, %58 : vector<16x8xi1>, vector<16x8xf32>
    %cst_35 = arith.constant dense<0.000000e+00> : vector<16x128xf32>
    %60 = tpu.matmul %54, %41, %cst_35 {dimension_numbers = #tpu.dot_dimension_numbers<[1], [0], [0], [1], [0, 0, 1, 1], [], []>} : vector<16x8xf32>, vector<8x128xf32>, vector<16x128xf32> -> vector<16x128xf32>
    %cst_36 = arith.constant dense<0.000000e+00> : vector<16x128xf32>
    %61 = tpu.matmul %59, %44, %cst_36 {dimension_numbers = #tpu.dot_dimension_numbers<[1], [0], [0], [1], [0, 0, 1, 1], [], []>} : vector<16x8xf32>, vector<8x128xf32>, vector<16x128xf32> -> vector<16x128xf32>
    %62 = arith.addf %60, %61 : vector<16x128xf32>
    %cst_37 = arith.constant 0.000000e+00 : f32
    %63 = vector.broadcast %cst_37 : f32 to vector<16x64xf32>
    %c0_38 = arith.constant 0 : index
    %c0_39 = arith.constant 0 : index
    %c0_40 = arith.constant 0 : index
    %64 = vector.load %arg4[%c0_38, %c0_39, %c0_40] : memref<3x128x64xf32, #tpu.memory_space<vmem>>, vector<1x128x64xf32>
    %65 = vector.shape_cast %64 : vector<1x128x64xf32> to vector<128x64xf32>
    %cst_41 = arith.constant 0.000000e+00 : f32
    %66 = vector.broadcast %cst_41 : f32 to vector<1x128xf32>
    %67 = vector.extract_strided_slice %62 {offsets = [0, 0], sizes = [15, 128], strides = [1, 1]} : vector<16x128xf32> to vector<15x128xf32>
    %68 = tpu.concatenate %66, %67 in 0 : vector<1x128xf32>, vector<15x128xf32> -> vector<16x128xf32>
    %cst_42 = arith.constant dense<0.000000e+00> : vector<16x64xf32>
    %69 = tpu.matmul %68, %65, %cst_42 {dimension_numbers = #tpu.dot_dimension_numbers<[1], [0], [0], [1], [0, 0, 1, 1], [], []>} : vector<16x128xf32>, vector<128x64xf32>, vector<16x64xf32> -> vector<16x64xf32>
    %70 = arith.addf %63, %69 : vector<16x64xf32>
    %c1_43 = arith.constant 1 : index
    %c0_44 = arith.constant 0 : index
    %c0_45 = arith.constant 0 : index
    %71 = vector.load %arg4[%c1_43, %c0_44, %c0_45] : memref<3x128x64xf32, #tpu.memory_space<vmem>>, vector<1x128x64xf32>
    %72 = vector.shape_cast %71 : vector<1x128x64xf32> to vector<128x64xf32>
    %c2_46 = arith.constant 2 : index
    %c0_47 = arith.constant 0 : index
    %c0_48 = arith.constant 0 : index
    %73 = vector.load %arg4[%c2_46, %c0_47, %c0_48] : memref<3x128x64xf32, #tpu.memory_space<vmem>>, vector<1x128x64xf32>
    %74 = vector.shape_cast %73 : vector<1x128x64xf32> to vector<128x64xf32>
    %75 = arith.addf %72, %74 : vector<128x64xf32>
    %cst_49 = arith.constant dense<0.000000e+00> : vector<16x64xf32>
    %76 = tpu.matmul %62, %75, %cst_49 {dimension_numbers = #tpu.dot_dimension_numbers<[1], [0], [0], [1], [0, 0, 1, 1], [], []>} : vector<16x128xf32>, vector<128x64xf32>, vector<16x64xf32> -> vector<16x64xf32>
    %77 = arith.addf %70, %76 : vector<16x64xf32>
    %c0_50 = arith.constant 0 : index
    %c0_51 = arith.constant 0 : index
    %78 = vector.load %arg5[%c0_50, %c0_51] : memref<1x64xf32, #tpu.memory_space<vmem>>, vector<1x64xf32>
    %79 = vector.broadcast %78 : vector<1x64xf32> to vector<16x64xf32>
    %80 = arith.addf %77, %79 : vector<16x64xf32>
    %cst_52 = arith.constant 0.000000e+00 : f32
    %81 = vector.broadcast %cst_52 : f32 to vector<16x64xf32>
    %c0_53 = arith.constant 0 : index
    %c0_54 = arith.constant 0 : index
    %c0_55 = arith.constant 0 : index
    %82 = vector.load %arg4[%c0_53, %c0_54, %c0_55] : memref<3x128x64xf32, #tpu.memory_space<vmem>>, vector<1x128x64xf32>
    %83 = vector.shape_cast %82 : vector<1x128x64xf32> to vector<128x64xf32>
    %c1_56 = arith.constant 1 : index
    %c0_57 = arith.constant 0 : index
    %c0_58 = arith.constant 0 : index
    %84 = vector.load %arg4[%c1_56, %c0_57, %c0_58] : memref<3x128x64xf32, #tpu.memory_space<vmem>>, vector<1x128x64xf32>
    %85 = vector.shape_cast %84 : vector<1x128x64xf32> to vector<128x64xf32>
    %86 = arith.addf %83, %85 : vector<128x64xf32>
    %cst_59 = arith.constant dense<0.000000e+00> : vector<16x64xf32>
    %87 = tpu.matmul %62, %86, %cst_59 {dimension_numbers = #tpu.dot_dimension_numbers<[1], [0], [0], [1], [0, 0, 1, 1], [], []>} : vector<16x128xf32>, vector<128x64xf32>, vector<16x64xf32> -> vector<16x64xf32>
    %88 = arith.addf %81, %87 : vector<16x64xf32>
    %c2_60 = arith.constant 2 : index
    %c0_61 = arith.constant 0 : index
    %c0_62 = arith.constant 0 : index
    %89 = vector.load %arg4[%c2_60, %c0_61, %c0_62] : memref<3x128x64xf32, #tpu.memory_space<vmem>>, vector<1x128x64xf32>
    %90 = vector.shape_cast %89 : vector<1x128x64xf32> to vector<128x64xf32>
    %cst_63 = arith.constant 0.000000e+00 : f32
    %91 = vector.broadcast %cst_63 : f32 to vector<1x128xf32>
    %92 = vector.extract_strided_slice %62 {offsets = [1, 0], sizes = [15, 128], strides = [1, 1]} : vector<16x128xf32> to vector<15x128xf32>
    %93 = tpu.concatenate %92, %91 in 0 : vector<15x128xf32>, vector<1x128xf32> -> vector<16x128xf32>
    %cst_64 = arith.constant dense<0.000000e+00> : vector<16x64xf32>
    %94 = tpu.matmul %93, %90, %cst_64 {dimension_numbers = #tpu.dot_dimension_numbers<[1], [0], [0], [1], [0, 0, 1, 1], [], []>} : vector<16x128xf32>, vector<128x64xf32>, vector<16x64xf32> -> vector<16x64xf32>
    %95 = arith.addf %88, %94 : vector<16x64xf32>
    %c0_65 = arith.constant 0 : index
    %c0_66 = arith.constant 0 : index
    %96 = vector.load %arg5[%c0_65, %c0_66] : memref<1x64xf32, #tpu.memory_space<vmem>>, vector<1x64xf32>
    %97 = vector.broadcast %96 : vector<1x64xf32> to vector<16x64xf32>
    %98 = arith.addf %95, %97 : vector<16x64xf32>
    %cst_67 = arith.constant 0.000000e+00 : f32
    %99 = vector.broadcast %cst_67 : f32 to vector<16x64xf32>
    %100 = arith.maximumf %80, %99 : vector<16x64xf32>
    %101 = math.tanh %100 : vector<16x64xf32>
    %cst_68 = arith.constant 0.000000e+00 : f32
    %102 = vector.broadcast %cst_68 : f32 to vector<16x64xf32>
    %103 = arith.maximumf %98, %102 : vector<16x64xf32>
    %104 = math.tanh %103 : vector<16x64xf32>
    %105 = tpu.iota {dimensions = array<i32: 0>} : vector<32x16xi32>
    %106 = tpu.iota {dimensions = array<i32: 1>} : vector<32x16xi32>
    %c2_i32_69 = arith.constant 2 : i32
    %107 = vector.broadcast %c2_i32_69 : i32 to vector<32x16xi32>
    %108 = arith.muli %107, %106 : vector<32x16xi32>
    %109 = arith.subi %105, %108 : vector<32x16xi32>
    %c0_i32_70 = arith.constant 0 : i32
    %110 = vector.broadcast %c0_i32_70 : i32 to vector<32x16xi32>
    %111 = arith.cmpi eq, %109, %110 : vector<32x16xi32>
    %cst_71 = arith.constant 1.000000e+00 : f32
    %cst_72 = arith.constant 0.000000e+00 : f32
    %112 = vector.broadcast %cst_71 : f32 to vector<32x16xf32>
    %113 = vector.broadcast %cst_72 : f32 to vector<32x16xf32>
    %114 = arith.select %111, %112, %113 : vector<32x16xi1>, vector<32x16xf32>
    %c1_i32_73 = arith.constant 1 : i32
    %115 = vector.broadcast %c1_i32_73 : i32 to vector<32x16xi32>
    %116 = arith.cmpi eq, %109, %115 : vector<32x16xi32>
    %cst_74 = arith.constant 1.000000e+00 : f32
    %cst_75 = arith.constant 0.000000e+00 : f32
    %117 = vector.broadcast %cst_74 : f32 to vector<32x16xf32>
    %118 = vector.broadcast %cst_75 : f32 to vector<32x16xf32>
    %119 = arith.select %116, %117, %118 : vector<32x16xi1>, vector<32x16xf32>
    %cst_76 = arith.constant dense<0.000000e+00> : vector<32x64xf32>
    %120 = tpu.matmul %114, %101, %cst_76 {dimension_numbers = #tpu.dot_dimension_numbers<[1], [0], [0], [1], [0, 0, 1, 1], [], []>} : vector<32x16xf32>, vector<16x64xf32>, vector<32x64xf32> -> vector<32x64xf32>
    %cst_77 = arith.constant dense<0.000000e+00> : vector<32x64xf32>
    %121 = tpu.matmul %119, %104, %cst_77 {dimension_numbers = #tpu.dot_dimension_numbers<[1], [0], [0], [1], [0, 0, 1, 1], [], []>} : vector<32x16xf32>, vector<16x64xf32>, vector<32x64xf32> -> vector<32x64xf32>
    %122 = arith.addf %120, %121 : vector<32x64xf32>
    %cst_78 = arith.constant 0.000000e+00 : f32
    %123 = vector.broadcast %cst_78 : f32 to vector<32x63xf32>
    %c0_79 = arith.constant 0 : index
    %c0_80 = arith.constant 0 : index
    %c0_81 = arith.constant 0 : index
    %124 = vector.load %arg6[%c0_79, %c0_80, %c0_81] : memref<3x64x63xf32, #tpu.memory_space<vmem>>, vector<1x64x63xf32>
    %125 = vector.shape_cast %124 : vector<1x64x63xf32> to vector<64x63xf32>
    %cst_82 = arith.constant 0.000000e+00 : f32
    %126 = vector.broadcast %cst_82 : f32 to vector<1x64xf32>
    %127 = vector.extract_strided_slice %122 {offsets = [0, 0], sizes = [31, 64], strides = [1, 1]} : vector<32x64xf32> to vector<31x64xf32>
    %128 = tpu.concatenate %126, %127 in 0 : vector<1x64xf32>, vector<31x64xf32> -> vector<32x64xf32>
    %cst_83 = arith.constant dense<0.000000e+00> : vector<32x63xf32>
    %129 = tpu.matmul %128, %125, %cst_83 {dimension_numbers = #tpu.dot_dimension_numbers<[1], [0], [0], [1], [0, 0, 1, 1], [], []>} : vector<32x64xf32>, vector<64x63xf32>, vector<32x63xf32> -> vector<32x63xf32>
    %130 = arith.addf %123, %129 : vector<32x63xf32>
    %c1_84 = arith.constant 1 : index
    %c0_85 = arith.constant 0 : index
    %c0_86 = arith.constant 0 : index
    %131 = vector.load %arg6[%c1_84, %c0_85, %c0_86] : memref<3x64x63xf32, #tpu.memory_space<vmem>>, vector<1x64x63xf32>
    %132 = vector.shape_cast %131 : vector<1x64x63xf32> to vector<64x63xf32>
    %c2_87 = arith.constant 2 : index
    %c0_88 = arith.constant 0 : index
    %c0_89 = arith.constant 0 : index
    %133 = vector.load %arg6[%c2_87, %c0_88, %c0_89] : memref<3x64x63xf32, #tpu.memory_space<vmem>>, vector<1x64x63xf32>
    %134 = vector.shape_cast %133 : vector<1x64x63xf32> to vector<64x63xf32>
    %135 = arith.addf %132, %134 : vector<64x63xf32>
    %cst_90 = arith.constant dense<0.000000e+00> : vector<32x63xf32>
    %136 = tpu.matmul %122, %135, %cst_90 {dimension_numbers = #tpu.dot_dimension_numbers<[1], [0], [0], [1], [0, 0, 1, 1], [], []>} : vector<32x64xf32>, vector<64x63xf32>, vector<32x63xf32> -> vector<32x63xf32>
    %137 = arith.addf %130, %136 : vector<32x63xf32>
    %c0_91 = arith.constant 0 : index
    %c0_92 = arith.constant 0 : index
    %138 = vector.load %arg7[%c0_91, %c0_92] : memref<1x63xf32, #tpu.memory_space<vmem>>, vector<1x63xf32>
    %139 = vector.broadcast %138 : vector<1x63xf32> to vector<32x63xf32>
    %140 = arith.addf %137, %139 : vector<32x63xf32>
    %cst_93 = arith.constant 0.000000e+00 : f32
    %141 = vector.broadcast %cst_93 : f32 to vector<32x63xf32>
    %c0_94 = arith.constant 0 : index
    %c0_95 = arith.constant 0 : index
    %c0_96 = arith.constant 0 : index
    %142 = vector.load %arg6[%c0_94, %c0_95, %c0_96] : memref<3x64x63xf32, #tpu.memory_space<vmem>>, vector<1x64x63xf32>
    %143 = vector.shape_cast %142 : vector<1x64x63xf32> to vector<64x63xf32>
    %c1_97 = arith.constant 1 : index
    %c0_98 = arith.constant 0 : index
    %c0_99 = arith.constant 0 : index
    %144 = vector.load %arg6[%c1_97, %c0_98, %c0_99] : memref<3x64x63xf32, #tpu.memory_space<vmem>>, vector<1x64x63xf32>
    %145 = vector.shape_cast %144 : vector<1x64x63xf32> to vector<64x63xf32>
    %146 = arith.addf %143, %145 : vector<64x63xf32>
    %cst_100 = arith.constant dense<0.000000e+00> : vector<32x63xf32>
    %147 = tpu.matmul %122, %146, %cst_100 {dimension_numbers = #tpu.dot_dimension_numbers<[1], [0], [0], [1], [0, 0, 1, 1], [], []>} : vector<32x64xf32>, vector<64x63xf32>, vector<32x63xf32> -> vector<32x63xf32>
    %148 = arith.addf %141, %147 : vector<32x63xf32>
    %c2_101 = arith.constant 2 : index
    %c0_102 = arith.constant 0 : index
    %c0_103 = arith.constant 0 : index
    %149 = vector.load %arg6[%c2_101, %c0_102, %c0_103] : memref<3x64x63xf32, #tpu.memory_space<vmem>>, vector<1x64x63xf32>
    %150 = vector.shape_cast %149 : vector<1x64x63xf32> to vector<64x63xf32>
    %cst_104 = arith.constant 0.000000e+00 : f32
    %151 = vector.broadcast %cst_104 : f32 to vector<1x64xf32>
    %152 = vector.extract_strided_slice %122 {offsets = [1, 0], sizes = [31, 64], strides = [1, 1]} : vector<32x64xf32> to vector<31x64xf32>
    %153 = tpu.concatenate %152, %151 in 0 : vector<31x64xf32>, vector<1x64xf32> -> vector<32x64xf32>
    %cst_105 = arith.constant dense<0.000000e+00> : vector<32x63xf32>
    %154 = tpu.matmul %153, %150, %cst_105 {dimension_numbers = #tpu.dot_dimension_numbers<[1], [0], [0], [1], [0, 0, 1, 1], [], []>} : vector<32x64xf32>, vector<64x63xf32>, vector<32x63xf32> -> vector<32x63xf32>
    %155 = arith.addf %148, %154 : vector<32x63xf32>
    %c0_106 = arith.constant 0 : index
    %c0_107 = arith.constant 0 : index
    %156 = vector.load %arg7[%c0_106, %c0_107] : memref<1x63xf32, #tpu.memory_space<vmem>>, vector<1x63xf32>
    %157 = vector.broadcast %156 : vector<1x63xf32> to vector<32x63xf32>
    %158 = arith.addf %155, %157 : vector<32x63xf32>
    %159 = math.tanh %140 : vector<32x63xf32>
    %160 = math.tanh %158 : vector<32x63xf32>
    %161 = tpu.iota {dimensions = array<i32: 0>} : vector<64x32xi32>
    %162 = tpu.iota {dimensions = array<i32: 1>} : vector<64x32xi32>
    %c2_i32_108 = arith.constant 2 : i32
    %163 = vector.broadcast %c2_i32_108 : i32 to vector<64x32xi32>
    %164 = arith.muli %163, %162 : vector<64x32xi32>
    %165 = arith.subi %161, %164 : vector<64x32xi32>
    %c0_i32_109 = arith.constant 0 : i32
    %166 = vector.broadcast %c0_i32_109 : i32 to vector<64x32xi32>
    %167 = arith.cmpi eq, %165, %166 : vector<64x32xi32>
    %cst_110 = arith.constant 1.000000e+00 : f32
    %cst_111 = arith.constant 0.000000e+00 : f32
    %168 = vector.broadcast %cst_110 : f32 to vector<64x32xf32>
    %169 = vector.broadcast %cst_111 : f32 to vector<64x32xf32>
    %170 = arith.select %167, %168, %169 : vector<64x32xi1>, vector<64x32xf32>
    %c1_i32_112 = arith.constant 1 : i32
    %171 = vector.broadcast %c1_i32_112 : i32 to vector<64x32xi32>
    %172 = arith.cmpi eq, %165, %171 : vector<64x32xi32>
    %cst_113 = arith.constant 1.000000e+00 : f32
    %cst_114 = arith.constant 0.000000e+00 : f32
    %173 = vector.broadcast %cst_113 : f32 to vector<64x32xf32>
    %174 = vector.broadcast %cst_114 : f32 to vector<64x32xf32>
    %175 = arith.select %172, %173, %174 : vector<64x32xi1>, vector<64x32xf32>
    %cst_115 = arith.constant dense<0.000000e+00> : vector<64x63xf32>
    %176 = tpu.matmul %170, %159, %cst_115 {dimension_numbers = #tpu.dot_dimension_numbers<[1], [0], [0], [1], [0, 0, 1, 1], [], []>} : vector<64x32xf32>, vector<32x63xf32>, vector<64x63xf32> -> vector<64x63xf32>
    %cst_116 = arith.constant dense<0.000000e+00> : vector<64x63xf32>
    %177 = tpu.matmul %175, %160, %cst_116 {dimension_numbers = #tpu.dot_dimension_numbers<[1], [0], [0], [1], [0, 0, 1, 1], [], []>} : vector<64x32xf32>, vector<32x63xf32>, vector<64x63xf32> -> vector<64x63xf32>
    %178 = arith.addf %176, %177 : vector<64x63xf32>
    %c0_117 = arith.constant 0 : index
    %c0_118 = arith.constant 0 : index
    %c0_119 = arith.constant 0 : index
    %179 = vector.load %arg8[%c0_117, %c0_118, %c0_119] : memref<1x64x63xf32, #tpu.memory_space<vmem>>, vector<1x64x63xf32>
    %180 = vector.shape_cast %179 : vector<1x64x63xf32> to vector<64x63xf32>
    %181 = vector.shape_cast %178 : vector<64x63xf32> to vector<1x64x63xf32>
    tpu.vector_store %arg8[%c0_117, %c0_118, %c0_119], %181 {strides = array<i32>} : memref<1x64x63xf32, #tpu.memory_space<vmem>>, vector<1x64x63xf32>,
    return
  }
  func.func @transform_0(%arg0: i32) -> (i32, i32, i32) {
    %c0_i32 = arith.constant 0 : i32
    %c0_i32_0 = arith.constant 0 : i32
    %c0_i32_1 = arith.constant 0 : i32
    return %arg0, %c0_i32, %c0_i32_0 : i32, i32, i32
  }
  func.func @transform_1(%arg0: i32) -> (i32, i32, i32) {
    %c0_i32 = arith.constant 0 : i32
    %c0_i32_0 = arith.constant 0 : i32
    %c0_i32_1 = arith.constant 0 : i32
    %c0_i32_2 = arith.constant 0 : i32
    return %c0_i32, %c0_i32_0, %c0_i32_1 : i32, i32, i32
  }
  func.func @transform_2(%arg0: i32) -> (i32, i32) {
    %c0_i32 = arith.constant 0 : i32
    %c0_i32_0 = arith.constant 0 : i32
    %c0_i32_1 = arith.constant 0 : i32
    return %c0_i32, %c0_i32_0 : i32, i32
  }
  func.func @transform_3(%arg0: i32) -> (i32, i32, i32) {
    %c0_i32 = arith.constant 0 : i32
    %c0_i32_0 = arith.constant 0 : i32
    %c0_i32_1 = arith.constant 0 : i32
    %c0_i32_2 = arith.constant 0 : i32
    return %c0_i32, %c0_i32_0, %c0_i32_1 : i32, i32, i32
  }
  func.func @transform_4(%arg0: i32) -> (i32, i32) {
    %c0_i32 = arith.constant 0 : i32
    %c0_i32_0 = arith.constant 0 : i32
    %c0_i32_1 = arith.constant 0 : i32
    return %c0_i32, %c0_i32_0 : i32, i32
  }
  func.func @transform_5(%arg0: i32) -> (i32, i32, i32) {
    %c0_i32 = arith.constant 0 : i32
    %c0_i32_0 = arith.constant 0 : i32
    %c0_i32_1 = arith.constant 0 : i32
    %c0_i32_2 = arith.constant 0 : i32
    return %c0_i32, %c0_i32_0, %c0_i32_1 : i32, i32, i32
  }
  func.func @transform_6(%arg0: i32) -> (i32, i32) {
    %c0_i32 = arith.constant 0 : i32
    %c0_i32_0 = arith.constant 0 : i32
    %c0_i32_1 = arith.constant 0 : i32
    return %c0_i32, %c0_i32_0 : i32, i32
  }
  func.func @transform_7(%arg0: i32) -> (i32, i32, i32) {
    %c0_i32 = arith.constant 0 : i32
    %c0_i32_0 = arith.constant 0 : i32
    %c0_i32_1 = arith.constant 0 : i32
    return %arg0, %c0_i32, %c0_i32_0 : i32, i32, i32
  }
}

</mosaic_0001>

<llo_original>
// kernel: decoder_forward.1
$region0: #{decoder_forward.1}
  #allocation0 [shape = 'u32[]', space=smem, size = 0x4, offset = 0x4, fixed_abs, tag = 'smem constant byte address 0x4 - core index']
  #allocation1 [shape = 'u32[144,128]{1,0:T(1,128)}', space=vmem, size = 0x12000, scoped, tag = 'internal scratch']
  %s0 = inlined_call_operand.vmem [shape: f32[2,8,256], index: 0, kind: input, shape index: {}]
  %s1 = inlined_call_operand.hbm [shape: f32[3,256,128], index: 1, kind: input, shape index: {}]
  %s2 = inlined_call_operand.vmem [shape: f32[1,128], index: 2, kind: input, shape index: {}]
  %s3 = inlined_call_operand.vmem [shape: f32[3,128,64], index: 3, kind: input, shape index: {}]
  %s4 = inlined_call_operand.vmem [shape: f32[1,64], index: 4, kind: input, shape index: {}]
  %s5 = inlined_call_operand.vmem [shape: f32[3,64,63], index: 5, kind: input, shape index: {}]
  %s6 = inlined_call_operand.vmem [shape: f32[1,63], index: 6, kind: input, shape index: {}]
  %s7 = inlined_call_operand.vmem [shape: f32[2,64,63], index: 7, kind: output, shape index: {}]
  %s8 = sld [smem:[#allocation0]]
  $region65: #{decoder_forward.1} parent=0
    _
  %s10 = ssub.s32 1, %s8
  %s11 = scalar_select 0, %s10, %s8
  $region1: #{decoder_forward.1} parent=0
    #allocation2 [shape = 'u8[393216]{0}', space=vmem, size = 0x60000, scoped, tag = 'input window, operand 1, single buffered']
    #allocation3 [shape = 's32[2]{0}', space=sflag, size = 0x8, scoped, tag = 'scoped memory for decoder_forward.1']
    %12 = vsyncpa [#allocation3], 0
    loop: start=0, step=1, limit=4
    $region2: #{decoder_forward.1} parent=1 // loop_pre_header
      _
    $region3: #{decoder_forward.1} parent=1 // loop_header
      %s14 = sphi 0, %s18
      %p15 = scmp.ge.s32.totalorder %s14, 4
      %s24 = sphi 0, %s26
      %s27 = sphi 0, %s24
      %s28 = sphi 0, %s27
      %s44 = sphi 0, %s28
      %s48 = sphi 0, %s48
      %s50 = sphi 0, %s48
      %s51 = sphi 0, %s50
      %s65 = sphi 0, %s51
      %s69 = sphi 0, %s69
      %s71 = sphi 0, %s69
      %s72 = sphi 0, %s71
      %s86 = sphi 0, %s72
      %s90 = sphi 0, %s90
      %s92 = sphi 0, %s90
      %s93 = sphi 0, %s92
      %s107 = sphi 0, %s93
      %s111 = sphi 0, %s111
      %s113 = sphi 0, %s111
      %s114 = sphi 0, %s113
      %s128 = sphi 0, %s114
      %s132 = sphi 0, %s132
      %s134 = sphi 0, %s132
      %s135 = sphi 0, %s134
      %s149 = sphi 0, %s135
      %s153 = sphi 0, %s153
      %s155 = sphi 0, %s153
      %s156 = sphi 0, %s155
      %s170 = sphi 0, %s156
      %s176 = sphi 0, %s178
      %s179 = sphi 0, %s176
      %s180 = sphi 0, %s179
      %s196 = sphi 0, %s180
    $region4: #{decoder_forward.1} parent=1 // loop_header_branch
      %17 = sbr.rel (%p15) target = $region8
    $region5: #{decoder_forward.1} parent=1 // loop_body
      %s19 = ssub.s32 %s14, 1
      %s20 = ssub.s32 %s14, 2
      %s21 = sadd.s32 %s14, 1
      %s22 = ssub.s32 %s14, %s21
      %p23 = scmp.eq.s32.totalorder %s22, 0
      %s25 = sadd.s32 %s24, 1
      %s26 = scalar_select %p23, %s24, %s25
      %p29 = pneg %p23
      %p30 = scmp.eq.s32.totalorder %s14, 1
      %p31 = por %p29, %p30
      %p32 = scmp.ne.s32.totalorder %s24, %s27
      %p33 = scmp.eq.s32.totalorder %s14, 0
      %p34 = por %p32, %p33
      %p35 = scmp.ne.s32.totalorder %s24, %s27
      %p36 = scmp.eq.s32.totalorder %s19, 1
      %p37 = por %p35, %p36
      %p38 = scmp.ne.s32.totalorder %s27, %s28
      %p39 = scmp.eq.s32.totalorder %s19, 0
      %p40 = por %p38, %p39
      %p41 = scmp.ne.s32.totalorder %s27, %s28
      %p42 = scmp.eq.s32.totalorder %s20, 1
      %p43 = por %p41, %p42
      %p45 = scmp.ne.s32.totalorder %s28, %s44
      %p46 = scmp.eq.s32.totalorder %s20, 0
      %p47 = por %p45, %p46
      %s49 = sadd.s32 %s48, 1
      %p52 = scmp.eq.s32.totalorder %s14, 1
      %p53 = scmp.ne.s32.totalorder %s48, %s50
      %p54 = scmp.eq.s32.totalorder %s14, 0
      %p55 = por %p53, %p54
      %p56 = scmp.ne.s32.totalorder %s48, %s50
      %p57 = scmp.eq.s32.totalorder %s19, 1
      %p58 = por %p56, %p57
      %p59 = scmp.ne.s32.totalorder %s50, %s51
      %p60 = scmp.eq.s32.totalorder %s19, 0
      %p61 = por %p59, %p60
      %p62 = scmp.ne.s32.totalorder %s50, %s51
      %p63 = scmp.eq.s32.totalorder %s20, 1
      %p64 = por %p62, %p63
      %p66 = scmp.ne.s32.totalorder %s51, %s65
      %p67 = scmp.eq.s32.totalorder %s20, 0
      %p68 = por %p66, %p67
      %s70 = sadd.s32 %s69, 1
      %p73 = scmp.eq.s32.totalorder %s14, 1
      %p74 = scmp.ne.s32.totalorder %s69, %s71
      %p75 = scmp.eq.s32.totalorder %s14, 0
      %p76 = por %p74, %p75
      %p77 = scmp.ne.s32.totalorder %s69, %s71
      %p78 = scmp.eq.s32.totalorder %s19, 1
      %p79 = por %p77, %p78
      %p80 = scmp.ne.s32.totalorder %s71, %s72
      %p81 = scmp.eq.s32.totalorder %s19, 0
      %p82 = por %p80, %p81
      %p83 = scmp.ne.s32.totalorder %s71, %s72
      %p84 = scmp.eq.s32.totalorder %s20, 1
      %p85 = por %p83, %p84
      %p87 = scmp.ne.s32.totalorder %s72, %s86
      %p88 = scmp.eq.s32.totalorder %s20, 0
      %p89 = por %p87, %p88
      %s91 = sadd.s32 %s90, 1
      %p94 = scmp.eq.s32.totalorder %s14, 1
      %p95 = scmp.ne.s32.totalorder %s90, %s92
      %p96 = scmp.eq.s32.totalorder %s14, 0
      %p97 = por %p95, %p96
      %p98 = scmp.ne.s32.totalorder %s90, %s92
      %p99 = scmp.eq.s32.totalorder %s19, 1
      %p100 = por %p98, %p99
      %p101 = scmp.ne.s32.totalorder %s92, %s93
      %p102 = scmp.eq.s32.totalorder %s19, 0
      %p103 = por %p101, %p102
      %p104 = scmp.ne.s32.totalorder %s92, %s93
      %p105 = scmp.eq.s32.totalorder %s20, 1
      %p106 = por %p104, %p105
      %p108 = scmp.ne.s32.totalorder %s93, %s107
      %p109 = scmp.eq.s32.totalorder %s20, 0
      %p110 = por %p108, %p109
      %s112 = sadd.s32 %s111, 1
      %p115 = scmp.eq.s32.totalorder %s14, 1
      %p116 = scmp.ne.s32.totalorder %s111, %s113
      %p117 = scmp.eq.s32.totalorder %s14, 0
      %p118 = por %p116, %p117
      %p119 = scmp.ne.s32.totalorder %s111, %s113
      %p120 = scmp.eq.s32.totalorder %s19, 1
      %p121 = por %p119, %p120
      %p122 = scmp.ne.s32.totalorder %s113, %s114
      %p123 = scmp.eq.s32.totalorder %s19, 0
      %p124 = por %p122, %p123
      %p125 = scmp.ne.s32.totalorder %s113, %s114
      %p126 = scmp.eq.s32.totalorder %s20, 1
      %p127 = por %p125, %p126
      %p129 = scmp.ne.s32.totalorder %s114, %s128
      %p130 = scmp.eq.s32.totalorder %s20, 0
      %p131 = por %p129, %p130
      %s133 = sadd.s32 %s132, 1
      %p136 = scmp.eq.s32.totalorder %s14, 1
      %p137 = scmp.ne.s32.totalorder %s132, %s134
      %p138 = scmp.eq.s32.totalorder %s14, 0
      %p139 = por %p137, %p138
      %p140 = scmp.ne.s32.totalorder %s132, %s134
      %p141 = scmp.eq.s32.totalorder %s19, 1
      %p142 = por %p140, %p141
      %p143 = scmp.ne.s32.totalorder %s134, %s135
      %p144 = scmp.eq.s32.totalorder %s19, 0
      %p145 = por %p143, %p144
      %p146 = scmp.ne.s32.totalorder %s134, %s135
      %p147 = scmp.eq.s32.totalorder %s20, 1
      %p148 = por %p146, %p147
      %p150 = scmp.ne.s32.totalorder %s135, %s149
      %p151 = scmp.eq.s32.totalorder %s20, 0
      %p152 = por %p150, %p151
      %s154 = sadd.s32 %s153, 1
      %p157 = scmp.eq.s32.totalorder %s14, 1
      %p158 = scmp.ne.s32.totalorder %s153, %s155
      %p159 = scmp.eq.s32.totalorder %s14, 0
      %p160 = por %p158, %p159
      %p161 = scmp.ne.s32.totalorder %s153, %s155
      %p162 = scmp.eq.s32.totalorder %s19, 1
      %p163 = por %p161, %p162
      %p164 = scmp.ne.s32.totalorder %s155, %s156
      %p165 = scmp.eq.s32.totalorder %s19, 0
      %p166 = por %p164, %p165
      %p167 = scmp.ne.s32.totalorder %s155, %s156
      %p168 = scmp.eq.s32.totalorder %s20, 1
      %p169 = por %p167, %p168
      %p171 = scmp.ne.s32.totalorder %s156, %s170
      %p172 = scmp.eq.s32.totalorder %s20, 0
      %p173 = por %p171, %p172
      %s174 = ssub.s32 %s14, %s21
      %p175 = scmp.eq.s32.totalorder %s174, 0
      %s177 = sadd.s32 %s176, 1
      %s178 = scalar_select %p175, %s176, %s177
      %p181 = pneg %p175
      %p182 = scmp.eq.s32.totalorder %s14, 1
      %p183 = por %p181, %p182
      %p184 = scmp.ne.s32.totalorder %s176, %s179
      %p185 = scmp.eq.s32.totalorder %s14, 0
      %p186 = por %p184, %p185
      %p187 = scmp.ne.s32.totalorder %s176, %s179
      %p188 = scmp.eq.s32.totalorder %s19, 1
      %p189 = por %p187, %p188
      %p190 = scmp.ne.s32.totalorder %s179, %s180
      %p191 = scmp.eq.s32.totalorder %s19, 0
      %p192 = por %p190, %p191
      %p193 = scmp.ne.s32.totalorder %s179, %s180
      %p194 = scmp.eq.s32.totalorder %s20, 1
      %p195 = por %p193, %p194
      %p197 = scmp.ne.s32.totalorder %s180, %s196
      %p198 = scmp.eq.s32.totalorder %s20, 0
      %p199 = por %p197, %p198
      %p200 = scmp.le.s32.totalorder 1, %s14
      %p201 = scmp.lt.s32.totalorder %s14, 3
      %p202 = pnand %p200, %p201
      %p203 = pneg %p202
      // Predicated region
      $region9: #{decoder_forward.1} parent=5 // pred_check
        _
      $region10: #{decoder_forward.1} parent=5 // pred_check_branch
        %205 = sbr.rel (%p202) target = $region12
      $region11: #{decoder_forward.1} parent=5 // pred_region
        %s206 = ssub.s32 %s14, 1
        // Predicated region
        $region13: #{decoder_forward.1} parent=11 // pred_check
          %p207 = pneg %p61
        $region14: #{decoder_forward.1} parent=11 // pred_check_branch
          %209 = sbr.rel (%p207) target = $region16
        $region15: #{decoder_forward.1} parent=11 // pred_region
          %s211 = ssub.s32 12288, 12288
          %212 = vsyncadd [#allocation3], %s211
          %s213 = sshll.u32 [#allocation2], 4
          %s214 = int_to_ptr.vmem [resolvable:$true] %s213
          %219 = dma.hbm_to_vmem [thread:$0]  %s1, 12288, %s214, [#allocation3], 128, 128, 8
        $region16: #{decoder_forward.1} parent=11 // pred_fallthru
          _
        // Predicated region
        $region17: #{decoder_forward.1} parent=11 // pred_check
          %p220 = pneg %p82
        $region18: #{decoder_forward.1} parent=11 // pred_check_branch
          %222 = sbr.rel (%p220) target = $region20
        $region19: #{decoder_forward.1} parent=11 // pred_region
          _
        $region20: #{decoder_forward.1} parent=11 // pred_fallthru
          _
        // Predicated region
        $region21: #{decoder_forward.1} parent=11 // pred_check
          %p223 = pneg %p103
        $region22: #{decoder_forward.1} parent=11 // pred_check_branch
          %225 = sbr.rel (%p223) target = $region24
        $region23: #{decoder_forward.1} parent=11 // pred_region
          _
        $region24: #{decoder_forward.1} parent=11 // pred_fallthru
          _
        // Predicated region
        $region25: #{decoder_forward.1} parent=11 // pred_check
          %p226 = pneg %p124
        $region26: #{decoder_forward.1} parent=11 // pred_check_branch
          %228 = sbr.rel (%p226) target = $region28
        $region27: #{decoder_forward.1} parent=11 // pred_region
          _
        $region28: #{decoder_forward.1} parent=11 // pred_fallthru
          _
        // Predicated region
        $region29: #{decoder_forward.1} parent=11 // pred_check
          %p229 = pneg %p145
        $region30: #{decoder_forward.1} parent=11 // pred_check_branch
          %231 = sbr.rel (%p229) target = $region32
        $region31: #{decoder_forward.1} parent=11 // pred_region
          _
        $region32: #{decoder_forward.1} parent=11 // pred_fallthru
          _
        // Predicated region
        $region33: #{decoder_forward.1} parent=11 // pred_check
          %p232 = pneg %p166
        $region34: #{decoder_forward.1} parent=11 // pred_check_branch
          %234 = sbr.rel (%p232) target = $region36
        $region35: #{decoder_forward.1} parent=11 // pred_region
          _
        $region36: #{decoder_forward.1} parent=11 // pred_fallthru
          _
      $region12: #{decoder_forward.1} parent=5 // pred_fallthru
        _
      %p235 = scmp.lt.s32.totalorder %s14, 2
      // Predicated region
      $region37: #{decoder_forward.1} parent=5 // pred_check
        %p236 = pneg %p235
      $region38: #{decoder_forward.1} parent=5 // pred_check_branch
        %238 = sbr.rel (%p236) target = $region40
      $region39: #{decoder_forward.1} parent=5 // pred_region
        // Predicated region
        $region41: #{decoder_forward.1} parent=39 // pred_check
          %p239 = pneg %p34
        $region42: #{decoder_forward.1} parent=39 // pred_check_branch
          %241 = sbr.rel (%p239) target = $region44
        $region43: #{decoder_forward.1} parent=39 // pred_region
          %p242 = scmp.lt.s32.totalorder %s14, 1
          %s243 = scalar_select %p242, %s14, 1
          %s244 = smul.addr %s243, 2
          %s245 = smul.addr %s244, 8
          %s246 = scalar_lea.vmem %s0, %s245
        $region44: #{decoder_forward.1} parent=39 // pred_fallthru
          _
      $region40: #{decoder_forward.1} parent=5 // pred_fallthru
        _
      %p247 = scmp.le.s32.totalorder 1, %s14
      %p248 = scmp.lt.s32.totalorder %s14, 3
      %p249 = pnand %p247, %p248
      %p250 = pneg %p249
      // Predicated region
      $region45: #{decoder_forward.1} parent=5 // pred_check
        _
      $region46: #{decoder_forward.1} parent=5 // pred_check_branch
        %252 = sbr.rel (%p249) target = $region48
      $region47: #{decoder_forward.1} parent=5 // pred_region
        %s253 = ssub.s32 %s14, 1
        // Predicated region
        $region49: #{decoder_forward.1} parent=47 // pred_check
          %p254 = pneg %p61
        $region50: #{decoder_forward.1} parent=47 // pred_check_branch
          %256 = sbr.rel (%p254) target = $region52
        $region51: #{decoder_forward.1} parent=47 // pred_region
          %257 = dma.done [#allocation3], 12288
        $region52: #{decoder_forward.1} parent=47 // pred_fallthru
          _
        %p258 = scmp.lt.s32.totalorder %s19, 1
        %s259 = scalar_select %p258, %s19, 1
        %s260 = smul.addr %s259, 2
        %s261 = smul.addr %s260, 8
        %s262 = scalar_lea.vmem %s0, %s261
        %p263 = pneg %p40
        %p264 = pneg %p37
        %p265 = pneg %p61
        %p266 = pneg %p58
        %p267 = pneg %p82
        %p268 = pneg %p79
        %p269 = pneg %p103
        %p270 = pneg %p100
        %p271 = pneg %p124
        %p272 = pneg %p121
        %p273 = pneg %p145
        %p274 = pneg %p142
        %p275 = pneg %p166
        %p276 = pneg %p163
        %p277 = pneg %p192
        %p278 = pneg %p189
        %p279 = scmp.lt.s32.totalorder %s19, 1
        %s280 = scalar_select %p279, %s19, 1
        %s281 = smul.addr %s280, 8
        %s282 = smul.addr %s281, 8
        %s283 = scalar_lea.vmem %s7, %s282
        %p284 = scmp.lt.s32.totalorder %s19, 1
        %s285 = scalar_select %p284, %s19, 1
        %s286 = smul.addr %s285, 2
        %s287 = smul.addr %s286, 8
        %s288 = scalar_lea.vmem %s0, %s287
        %p289 = scmp.lt.s32.totalorder %s19, 1
        %s290 = scalar_select %p289, %s19, 1
        %s291 = smul.addr %s290, 8
        %s292 = smul.addr %s291, 8
        %s293 = scalar_lea.vmem %s7, %s292
        %v294 = vld [vmem:[%s288] sm:$0xff]
        %v295 = vld [vmem:[%s288 + $0x8] sm:$0xff]
        %v296 = vtanh.pop %v294
        %v297 = vtanh.pop %v295
        %v298 = vld [vmem:[#allocation2] sm:$0xff]
        %v299 = vld [vmem:[#allocation2 + $0x8] sm:$0xff]
        %v300 = vld [vmem:[#allocation2 + $0x10] sm:$0xff]
        %v301 = vld [vmem:[#allocation2 + $0x18] sm:$0xff]
        %v302 = vld [vmem:[#allocation2 + $0x20] sm:$0xff]
        %v303 = vld [vmem:[#allocation2 + $0x28] sm:$0xff]
        %v304 = vld [vmem:[#allocation2 + $0x30] sm:$0xff]
        %v305 = vld [vmem:[#allocation2 + $0x38] sm:$0xff]
        %v306 = vld [vmem:[#allocation2 + $0x40] sm:$0xff]
        %v307 = vld [vmem:[#allocation2 + $0x48] sm:$0xff]
        %v308 = vld [vmem:[#allocation2 + $0x50] sm:$0xff]
        %v309 = vld [vmem:[#allocation2 + $0x58] sm:$0xff]
        %v310 = vld [vmem:[#allocation2 + $0x60] sm:$0xff]
        %v311 = vld [vmem:[#allocation2 + $0x68] sm:$0xff]
        %v312 = vld [vmem:[#allocation2 + $0x70] sm:$0xff]
        %v313 = vld [vmem:[#allocation2 + $0x78] sm:$0xff]
        %v314 = vld [vmem:[#allocation2 + $0x80] sm:$0xff]
        %v315 = vld [vmem:[#allocation2 + $0x88] sm:$0xff]
        %v316 = vld [vmem:[#allocation2 + $0x90] sm:$0xff]
        %v317 = vld [vmem:[#allocation2 + $0x98] sm:$0xff]
        %v318 = vld [vmem:[#allocation2 + $0xa0] sm:$0xff]
        %v319 = vld [vmem:[#allocation2 + $0xa8] sm:$0xff]
        %v320 = vld [vmem:[#allocation2 + $0xb0] sm:$0xff]
        %v321 = vld [vmem:[#allocation2 + $0xb8] sm:$0xff]
        %v322 = vld [vmem:[#allocation2 + $0xc0] sm:$0xff]
        %v323 = vld [vmem:[#allocation2 + $0xc8] sm:$0xff]
        %v324 = vld [vmem:[#allocation2 + $0xd0] sm:$0xff]
        %v325 = vld [vmem:[#allocation2 + $0xd8] sm:$0xff]
        %v326 = vld [vmem:[#allocation2 + $0xe0] sm:$0xff]
        %v327 = vld [vmem:[#allocation2 + $0xe8] sm:$0xff]
        %v328 = vld [vmem:[#allocation2 + $0xf0] sm:$0xff]
        %v329 = vld [vmem:[#allocation2 + $0xf8] sm:$0xff]
        %v332 = vrot.slane %v296, 7
        %v333 = vrot.slane %v297, 7
        %vm336 = vcmask 1040384
        %v337 = vsel %vm336, 0.0, %v332
        %v338 = vsel %vm336, 0.0, %v333
        %s339 = scalar_lea.vmem [#allocation2], 256
        %v340 = vld [vmem:[%s339] sm:$0xff]
        %v341 = vld [vmem:[%s339 + $0x8] sm:$0xff]
        %v342 = vld [vmem:[%s339 + $0x10] sm:$0xff]
        %v343 = vld [vmem:[%s339 + $0x18] sm:$0xff]
        %v344 = vld [vmem:[%s339 + $0x20] sm:$0xff]
        %v345 = vld [vmem:[%s339 + $0x28] sm:$0xff]
        %v346 = vld [vmem:[%s339 + $0x30] sm:$0xff]
        %v347 = vld [vmem:[%s339 + $0x38] sm:$0xff]
        %v348 = vld [vmem:[%s339 + $0x40] sm:$0xff]
        %v349 = vld [vmem:[%s339 + $0x48] sm:$0xff]
        %v350 = vld [vmem:[%s339 + $0x50] sm:$0xff]
        %v351 = vld [vmem:[%s339 + $0x58] sm:$0xff]
        %v352 = vld [vmem:[%s339 + $0x60] sm:$0xff]
        %v353 = vld [vmem:[%s339 + $0x68] sm:$0xff]
        %v354 = vld [vmem:[%s339 + $0x70] sm:$0xff]
        %v355 = vld [vmem:[%s339 + $0x78] sm:$0xff]
        %v356 = vld [vmem:[%s339 + $0x80] sm:$0xff]
        %v357 = vld [vmem:[%s339 + $0x88] sm:$0xff]
        %v358 = vld [vmem:[%s339 + $0x90] sm:$0xff]
        %v359 = vld [vmem:[%s339 + $0x98] sm:$0xff]
        %v360 = vld [vmem:[%s339 + $0xa0] sm:$0xff]
        %v361 = vld [vmem:[%s339 + $0xa8] sm:$0xff]
        %v362 = vld [vmem:[%s339 + $0xb0] sm:$0xff]
        %v363 = vld [vmem:[%s339 + $0xb8] sm:$0xff]
        %v364 = vld [vmem:[%s339 + $0xc0] sm:$0xff]
        %v365 = vld [vmem:[%s339 + $0xc8] sm:$0xff]
        %v366 = vld [vmem:[%s339 + $0xd0] sm:$0xff]
        %v367 = vld [vmem:[%s339 + $0xd8] sm:$0xff]
        %v368 = vld [vmem:[%s339 + $0xe0] sm:$0xff]
        %v369 = vld [vmem:[%s339 + $0xe8] sm:$0xff]
        %v370 = vld [vmem:[%s339 + $0xf0] sm:$0xff]
        %v371 = vld [vmem:[%s339 + $0xf8] sm:$0xff]
        %s372 = scalar_lea.vmem [#allocation2], 512
        %v373 = vld [vmem:[%s372] sm:$0xff]
        %v374 = vld [vmem:[%s372 + $0x8] sm:$0xff]
        %v375 = vld [vmem:[%s372 + $0x10] sm:$0xff]
        %v376 = vld [vmem:[%s372 + $0x18] sm:$0xff]
        %v377 = vld [vmem:[%s372 + $0x20] sm:$0xff]
        %v378 = vld [vmem:[%s372 + $0x28] sm:$0xff]
        %v379 = vld [vmem:[%s372 + $0x30] sm:$0xff]
        %v380 = vld [vmem:[%s372 + $0x38] sm:$0xff]
        %v381 = vld [vmem:[%s372 + $0x40] sm:$0xff]
        %v382 = vld [vmem:[%s372 + $0x48] sm:$0xff]
        %v383 = vld [vmem:[%s372 + $0x50] sm:$0xff]
        %v384 = vld [vmem:[%s372 + $0x58] sm:$0xff]
        %v385 = vld [vmem:[%s372 + $0x60] sm:$0xff]
        %v386 = vld [vmem:[%s372 + $0x68] sm:$0xff]
        %v387 = vld [vmem:[%s372 + $0x70] sm:$0xff]
        %v388 = vld [vmem:[%s372 + $0x78] sm:$0xff]
        %v389 = vld [vmem:[%s372 + $0x80] sm:$0xff]
        %v390 = vld [vmem:[%s372 + $0x88] sm:$0xff]
        %v391 = vld [vmem:[%s372 + $0x90] sm:$0xff]
        %v392 = vld [vmem:[%s372 + $0x98] sm:$0xff]
        %v393 = vld [vmem:[%s372 + $0xa0] sm:$0xff]
        %v394 = vld [vmem:[%s372 + $0xa8] sm:$0xff]
        %v395 = vld [vmem:[%s372 + $0xb0] sm:$0xff]
        %v396 = vld [vmem:[%s372 + $0xb8] sm:$0xff]
        %v397 = vld [vmem:[%s372 + $0xc0] sm:$0xff]
        %v398 = vld [vmem:[%s372 + $0xc8] sm:$0xff]
        %v399 = vld [vmem:[%s372 + $0xd0] sm:$0xff]
        %v400 = vld [vmem:[%s372 + $0xd8] sm:$0xff]
        %v401 = vld [vmem:[%s372 + $0xe0] sm:$0xff]
        %v402 = vld [vmem:[%s372 + $0xe8] sm:$0xff]
        %v403 = vld [vmem:[%s372 + $0xf0] sm:$0xff]
        %v404 = vld [vmem:[%s372 + $0xf8] sm:$0xff]
        %v405 = vadd.f32 %v340, %v373
        %v406 = vadd.f32 %v341, %v374
        %v407 = vadd.f32 %v342, %v375
        %v408 = vadd.f32 %v343, %v376
        %v409 = vadd.f32 %v344, %v377
        %v410 = vadd.f32 %v345, %v378
        %v411 = vadd.f32 %v346, %v379
        %v412 = vadd.f32 %v347, %v380
        %v413 = vadd.f32 %v348, %v381
        %v414 = vadd.f32 %v349, %v382
        %v415 = vadd.f32 %v350, %v383
        %v416 = vadd.f32 %v351, %v384
        %v417 = vadd.f32 %v352, %v385
        %v418 = vadd.f32 %v353, %v386
        %v419 = vadd.f32 %v354, %v387
        %v420 = vadd.f32 %v355, %v388
        %v421 = vadd.f32 %v356, %v389
        %v422 = vadd.f32 %v357, %v390
        %v423 = vadd.f32 %v358, %v391
        %v424 = vadd.f32 %v359, %v392
        %v425 = vadd.f32 %v360, %v393
        %v426 = vadd.f32 %v361, %v394
        %v427 = vadd.f32 %v362, %v395
        %v428 = vadd.f32 %v363, %v396
        %v429 = vadd.f32 %v364, %v397
        %v430 = vadd.f32 %v365, %v398
        %v431 = vadd.f32 %v366, %v399
        %v432 = vadd.f32 %v367, %v400
        %v433 = vadd.f32 %v368, %v401
        %v434 = vadd.f32 %v369, %v402
        %v435 = vadd.f32 %v370, %v403
        %v436 = vadd.f32 %v371, %v404
        %437 = vmatprep.subr.mxu0 0.0
        %438 = vmatpush1.msra.mxu0 %v405
        %439 = vmatprep.subr.mxu0 0.0
        %440 = vmatpush1.msra.mxu0 %v406
        %441 = vmatprep.subr.mxu0 0.0
        %442 = vmatpush1.msra.mxu0 %v407
        %443 = vmatprep.subr.mxu0 0.0
        %444 = vmatpush1.msra.mxu0 %v408
        %445 = vmatprep.subr.mxu0 0.0
        %446 = vmatpush1.msra.mxu0 %v409
        %447 = vmatprep.subr.mxu0 0.0
        %448 = vmatpush1.msra.mxu0 %v410
        %449 = vmatprep.subr.mxu0 0.0
        %450 = vmatpush1.msra.mxu0 %v411
        %451 = vmatprep.subr.mxu0 0.0
        %452 = vmatpush1.msra.mxu0 %v412
        %453 = vmatprep.subr.mxu0 0.0
        %454 = vmatpush1.msra.mxu0 %v413
        %455 = vmatprep.subr.mxu0 0.0
        %456 = vmatpush1.msra.mxu0 %v414
        %457 = vmatprep.subr.mxu0 0.0
        %458 = vmatpush1.msra.mxu0 %v415
        %459 = vmatprep.subr.mxu0 0.0
        %460 = vmatpush1.msra.mxu0 %v416
        %461 = vmatprep.subr.mxu0 0.0
        %462 = vmatpush1.msra.mxu0 %v417
        %463 = vmatprep.subr.mxu0 0.0
        %464 = vmatpush1.msra.mxu0 %v418
        %465 = vmatprep.subr.mxu0 0.0
        %466 = vmatpush1.msra.mxu0 %v419
        %467 = vmatprep.subr.mxu0 0.0
        %468 = vmatpush1.msra.mxu0 %v420
        %469 = vmatprep.subr.mxu0 0.0
        %470 = vmatpush1.msra.mxu0 %v421
        %471 = vmatprep.subr.mxu0 0.0
        %472 = vmatpush1.msra.mxu0 %v422
        %473 = vmatprep.subr.mxu0 0.0
        %474 = vmatpush1.msra.mxu0 %v423
        %475 = vmatprep.subr.mxu0 0.0
        %476 = vmatpush1.msra.mxu0 %v424
        %477 = vmatprep.subr.mxu0 0.0
        %478 = vmatpush1.msra.mxu0 %v425
        %479 = vmatprep.subr.mxu0 0.0
        %480 = vmatpush1.msra.mxu0 %v426
        %481 = vmatprep.subr.mxu0 0.0
        %482 = vmatpush1.msra.mxu0 %v427
        %483 = vmatprep.subr.mxu0 0.0
        %484 = vmatpush1.msra.mxu0 %v428
        %485 = vmatprep.subr.mxu0 0.0
        %486 = vmatpush1.msra.mxu0 %v429
        %487 = vmatprep.subr.mxu0 0.0
        %488 = vmatpush1.msra.mxu0 %v430
        %489 = vmatprep.subr.mxu0 0.0
        %490 = vmatpush1.msra.mxu0 %v431
        %491 = vmatprep.subr.mxu0 0.0
        %492 = vmatpush1.msra.mxu0 %v432
        %493 = vmatprep.subr.mxu0 0.0
        %494 = vmatpush1.msra.mxu0 %v433
        %495 = vmatprep.subr.mxu0 0.0
        %496 = vmatpush1.msra.mxu0 %v434
        %497 = vmatprep.subr.mxu0 0.0
        %498 = vmatpush1.msra.mxu0 %v435
        %499 = vmatprep.subr.mxu0 0.0
        %500 = vmatpush1.msra.mxu0 %v436
        %501 = vmatprep.mubr.f32.mxu0 %v297
        %502 = vmatmul.mubr.f32.gmra.mrb[0].mxu0 %v296
        %v503 = vpop.f32.mrb[0].mxu0
        %v504 = vadd.f32 0.0, %v503
        %v505 = vpop.f32.mrb[0].mxu0
        %506 = vdwg.mxu0
        %507 = vmatprep.subr.mxu0 0.0
        %508 = vmatpush1.msra.mxu0 %v298
        %509 = vmatprep.subr.mxu0 0.0
        %510 = vmatpush1.msra.mxu0 %v299
        %511 = vmatprep.subr.mxu0 0.0
        %512 = vmatpush1.msra.mxu0 %v300
        %513 = vmatprep.subr.mxu0 0.0
        %514 = vmatpush1.msra.mxu0 %v301
        %515 = vmatprep.subr.mxu0 0.0
        %516 = vmatpush1.msra.mxu0 %v302
        %517 = vmatprep.subr.mxu0 0.0
        %518 = vmatpush1.msra.mxu0 %v303
        %519 = vmatprep.subr.mxu0 0.0
        %520 = vmatpush1.msra.mxu0 %v304
        %521 = vmatprep.subr.mxu0 0.0
        %522 = vmatpush1.msra.mxu0 %v305
        %523 = vmatprep.subr.mxu0 0.0
        %524 = vmatpush1.msra.mxu0 %v306
        %525 = vmatprep.subr.mxu0 0.0
        %526 = vmatpush1.msra.mxu0 %v307
        %527 = vmatprep.subr.mxu0 0.0
        %528 = vmatpush1.msra.mxu0 %v308
        %529 = vmatprep.subr.mxu0 0.0
        %530 = vmatpush1.msra.mxu0 %v309
        %531 = vmatprep.subr.mxu0 0.0
        %532 = vmatpush1.msra.mxu0 %v310
        %533 = vmatprep.subr.mxu0 0.0
        %534 = vmatpush1.msra.mxu0 %v311
        %535 = vmatprep.subr.mxu0 0.0
        %536 = vmatpush1.msra.mxu0 %v312
        %537 = vmatprep.subr.mxu0 0.0
        %538 = vmatpush1.msra.mxu0 %v313
        %539 = vmatprep.subr.mxu0 0.0
        %540 = vmatpush1.msra.mxu0 %v314
        %541 = vmatprep.subr.mxu0 0.0
        %542 = vmatpush1.msra.mxu0 %v315
        %543 = vmatprep.subr.mxu0 0.0
        %544 = vmatpush1.msra.mxu0 %v316
        %545 = vmatprep.subr.mxu0 0.0
        %546 = vmatpush1.msra.mxu0 %v317
        %547 = vmatprep.subr.mxu0 0.0
        %548 = vmatpush1.msra.mxu0 %v318
        %549 = vmatprep.subr.mxu0 0.0
        %550 = vmatpush1.msra.mxu0 %v319
        %551 = vmatprep.subr.mxu0 0.0
        %552 = vmatpush1.msra.mxu0 %v320
        %553 = vmatprep.subr.mxu0 0.0
        %554 = vmatpush1.msra.mxu0 %v321
        %555 = vmatprep.subr.mxu0 0.0
        %556 = vmatpush1.msra.mxu0 %v322
        %557 = vmatprep.subr.mxu0 0.0
        %558 = vmatpush1.msra.mxu0 %v323
        %559 = vmatprep.subr.mxu0 0.0
        %560 = vmatpush1.msra.mxu0 %v324
        %561 = vmatprep.subr.mxu0 0.0
        %562 = vmatpush1.msra.mxu0 %v325
        %563 = vmatprep.subr.mxu0 0.0
        %564 = vmatpush1.msra.mxu0 %v326
        %565 = vmatprep.subr.mxu0 0.0
        %566 = vmatpush1.msra.mxu0 %v327
        %567 = vmatprep.subr.mxu0 0.0
        %568 = vmatpush1.msra.mxu0 %v328
        %569 = vmatprep.subr.mxu0 0.0
        %570 = vmatpush1.msra.mxu0 %v329
        %571 = vmatprep.mubr.f32.mxu0 %v338
        %572 = vmatmul.mubr.f32.gmra.mrb[0].mxu0 %v337
        %v573 = vpop.f32.mrb[0].mxu0
        %v574 = vadd.f32 %v504, %v573
        %v575 = vpop.f32.mrb[0].mxu0
        %576 = vdwg.mxu0
        %v577 = vld [vmem:[%s2] sm:$0x1]
        %v579 = vlaneseq
        %v580 = vshrl.u32 %v579, 7
        %v581 = vsub.s32 0, %v580
        %v582 = vrot.slane %v577, %v581
        %v584 = vadd.f32 %v574, %v582
        %v585 = vadd.f32 %v298, %v340
        %v586 = vadd.f32 %v299, %v341
        %v587 = vadd.f32 %v300, %v342
        %v588 = vadd.f32 %v301, %v343
        %v589 = vadd.f32 %v302, %v344
        %v590 = vadd.f32 %v303, %v345
        %v591 = vadd.f32 %v304, %v346
        %v592 = vadd.f32 %v305, %v347
        %v593 = vadd.f32 %v306, %v348
        %v594 = vadd.f32 %v307, %v349
        %v595 = vadd.f32 %v308, %v350
        %v596 = vadd.f32 %v309, %v351
        %v597 = vadd.f32 %v310, %v352
        %v598 = vadd.f32 %v311, %v353
        %v599 = vadd.f32 %v312, %v354
        %v600 = vadd.f32 %v313, %v355
        %v601 = vadd.f32 %v314, %v356
        %v602 = vadd.f32 %v315, %v357
        %v603 = vadd.f32 %v316, %v358
        %v604 = vadd.f32 %v317, %v359
        %v605 = vadd.f32 %v318, %v360
        %v606 = vadd.f32 %v319, %v361
        %v607 = vadd.f32 %v320, %v362
        %v608 = vadd.f32 %v321, %v363
        %v609 = vadd.f32 %v322, %v364
        %v610 = vadd.f32 %v323, %v365
        %v611 = vadd.f32 %v324, %v366
        %v612 = vadd.f32 %v325, %v367
        %v613 = vadd.f32 %v326, %v368
        %v614 = vadd.f32 %v327, %v369
        %v615 = vadd.f32 %v328, %v370
        %v616 = vadd.f32 %v329, %v371
        %v617 = vrot.slane %v296, 1
        %v618 = vrot.slane %v297, 1
        %vm621 = vcmask 1046528
        %v622 = vsel %vm621, %v617, 0.0
        %v623 = vsel %vm621, %v618, 0.0
        %624 = vmatprep.subr.mxu0 0.0
        %625 = vmatpush1.msra.mxu0 %v373
        %626 = vmatprep.subr.mxu0 0.0
        %627 = vmatpush1.msra.mxu0 %v374
        %628 = vmatprep.subr.mxu0 0.0
        %629 = vmatpush1.msra.mxu0 %v375
        %630 = vmatprep.subr.mxu0 0.0
        %631 = vmatpush1.msra.mxu0 %v376
        %632 = vmatprep.subr.mxu0 0.0
        %633 = vmatpush1.msra.mxu0 %v377
        %634 = vmatprep.subr.mxu0 0.0
        %635 = vmatpush1.msra.mxu0 %v378
        %636 = vmatprep.subr.mxu0 0.0
        %637 = vmatpush1.msra.mxu0 %v379
        %638 = vmatprep.subr.mxu0 0.0
        %639 = vmatpush1.msra.mxu0 %v380
        %640 = vmatprep.subr.mxu0 0.0
        %641 = vmatpush1.msra.mxu0 %v381
        %642 = vmatprep.subr.mxu0 0.0
        %643 = vmatpush1.msra.mxu0 %v382
        %644 = vmatprep.subr.mxu0 0.0
        %645 = vmatpush1.msra.mxu0 %v383
        %646 = vmatprep.subr.mxu0 0.0
        %647 = vmatpush1.msra.mxu0 %v384
        %648 = vmatprep.subr.mxu0 0.0
        %649 = vmatpush1.msra.mxu0 %v385
        %650 = vmatprep.subr.mxu0 0.0
        %651 = vmatpush1.msra.mxu0 %v386
        %652 = vmatprep.subr.mxu0 0.0
        %653 = vmatpush1.msra.mxu0 %v387
        %654 = vmatprep.subr.mxu0 0.0
        %655 = vmatpush1.msra.mxu0 %v388
        %656 = vmatprep.subr.mxu0 0.0
        %657 = vmatpush1.msra.mxu0 %v389
        %658 = vmatprep.subr.mxu0 0.0
        %659 = vmatpush1.msra.mxu0 %v390
        %660 = vmatprep.subr.mxu0 0.0
        %661 = vmatpush1.msra.mxu0 %v391
        %662 = vmatprep.subr.mxu0 0.0
        %663 = vmatpush1.msra.mxu0 %v392
        %664 = vmatprep.subr.mxu0 0.0
        %665 = vmatpush1.msra.mxu0 %v393
        %666 = vmatprep.subr.mxu0 0.0
        %667 = vmatpush1.msra.mxu0 %v394
        %668 = vmatprep.subr.mxu0 0.0
        %669 = vmatpush1.msra.mxu0 %v395
        %670 = vmatprep.subr.mxu0 0.0
        %671 = vmatpush1.msra.mxu0 %v396
        %672 = vmatprep.subr.mxu0 0.0
        %673 = vmatpush1.msra.mxu0 %v397
        %674 = vmatprep.subr.mxu0 0.0
        %675 = vmatpush1.msra.mxu0 %v398
        %676 = vmatprep.subr.mxu0 0.0
        %677 = vmatpush1.msra.mxu0 %v399
        %678 = vmatprep.subr.mxu0 0.0
        %679 = vmatpush1.msra.mxu0 %v400
        %680 = vmatprep.subr.mxu0 0.0
        %681 = vmatpush1.msra.mxu0 %v401
        %682 = vmatprep.subr.mxu0 0.0
        %683 = vmatpush1.msra.mxu0 %v402
        %684 = vmatprep.subr.mxu0 0.0
        %685 = vmatpush1.msra.mxu0 %v403
        %686 = vmatprep.subr.mxu0 0.0
        %687 = vmatpush1.msra.mxu0 %v404
        %688 = vmatprep.mubr.f32.mxu0 %v623
        %689 = vmatmul.mubr.f32.gmra.mrb[0].mxu0 %v622
        %v690 = vpop.f32.mrb[0].mxu0
        %v691 = vadd.f32 0.0, %v690
        %v692 = vpop.f32.mrb[0].mxu0
        %693 = vdwg.mxu0
        %694 = vmatprep.subr.mxu0 0.0
        %695 = vmatpush1.msra.mxu0 %v585
        %696 = vmatprep.subr.mxu0 0.0
        %697 = vmatpush1.msra.mxu0 %v586
        %698 = vmatprep.subr.mxu0 0.0
        %699 = vmatpush1.msra.mxu0 %v587
        %700 = vmatprep.subr.mxu0 0.0
        %701 = vmatpush1.msra.mxu0 %v588
        %702 = vmatprep.subr.mxu0 0.0
        %703 = vmatpush1.msra.mxu0 %v589
        %704 = vmatprep.subr.mxu0 0.0
        %705 = vmatpush1.msra.mxu0 %v590
        %706 = vmatprep.subr.mxu0 0.0
        %707 = vmatpush1.msra.mxu0 %v591
        %708 = vmatprep.subr.mxu0 0.0
        %709 = vmatpush1.msra.mxu0 %v592
        %710 = vmatprep.subr.mxu0 0.0
        %711 = vmatpush1.msra.mxu0 %v593
        %712 = vmatprep.subr.mxu0 0.0
        %713 = vmatpush1.msra.mxu0 %v594
        %714 = vmatprep.subr.mxu0 0.0
        %715 = vmatpush1.msra.mxu0 %v595
        %716 = vmatprep.subr.mxu0 0.0
        %717 = vmatpush1.msra.mxu0 %v596
        %718 = vmatprep.subr.mxu0 0.0
        %719 = vmatpush1.msra.mxu0 %v597
        %720 = vmatprep.subr.mxu0 0.0
        %721 = vmatpush1.msra.mxu0 %v598
        %722 = vmatprep.subr.mxu0 0.0
        %723 = vmatpush1.msra.mxu0 %v599
        %724 = vmatprep.subr.mxu0 0.0
        %725 = vmatpush1.msra.mxu0 %v600
        %726 = vmatprep.subr.mxu0 0.0
        %727 = vmatpush1.msra.mxu0 %v601
        %728 = vmatprep.subr.mxu0 0.0
        %729 = vmatpush1.msra.mxu0 %v602
        %730 = vmatprep.subr.mxu0 0.0
        %731 = vmatpush1.msra.mxu0 %v603
        %732 = vmatprep.subr.mxu0 0.0
        %733 = vmatpush1.msra.mxu0 %v604
        %734 = vmatprep.subr.mxu0 0.0
        %735 = vmatpush1.msra.mxu0 %v605
        %736 = vmatprep.subr.mxu0 0.0
        %737 = vmatpush1.msra.mxu0 %v606
        %738 = vmatprep.subr.mxu0 0.0
        %739 = vmatpush1.msra.mxu0 %v607
        %740 = vmatprep.subr.mxu0 0.0
        %741 = vmatpush1.msra.mxu0 %v608
        %742 = vmatprep.subr.mxu0 0.0
        %743 = vmatpush1.msra.mxu0 %v609
        %744 = vmatprep.subr.mxu0 0.0
        %745 = vmatpush1.msra.mxu0 %v610
        %746 = vmatprep.subr.mxu0 0.0
        %747 = vmatpush1.msra.mxu0 %v611
        %748 = vmatprep.subr.mxu0 0.0
        %749 = vmatpush1.msra.mxu0 %v612
        %750 = vmatprep.subr.mxu0 0.0
        %751 = vmatpush1.msra.mxu0 %v613
        %752 = vmatprep.subr.mxu0 0.0
        %753 = vmatpush1.msra.mxu0 %v614
        %754 = vmatprep.subr.mxu0 0.0
        %755 = vmatpush1.msra.mxu0 %v615
        %756 = vmatprep.subr.mxu0 0.0
        %757 = vmatpush1.msra.mxu0 %v616
        %758 = vmatprep.mubr.f32.mxu0 %v297
        %759 = vmatmul.mubr.f32.gmra.mrb[0].mxu0 %v296
        %v760 = vpop.f32.mrb[0].mxu0
        %v761 = vadd.f32 %v691, %v760
        %v762 = vpop.f32.mrb[0].mxu0
        %763 = vdwg.mxu0
        %v764 = vadd.f32 %v761, %v582
        %v765 = vmax.f32 %v584, 0.0
        %v766 = vtanh.pop %v765
        %v767 = vmax.f32 %v764, 0.0
        %v768 = vtanh.pop %v767
        %v769 = vlaneseq
        %v770 = vshrl.u32 %v769, 7
        %v771 = vadd.s32 %v770, 8
        %v772 = vlaneseq
        %v773 = vand.u32 %v772, 127
        %v774 = vmul.u32 %v773, 2
        %v775 = vsub.s32 %v770, %v774
        %v776 = vsub.s32 %v771, %v774
        %vm777 = vcmp.eq.s32.totalorder %v775, 0
        %vm778 = vcmp.eq.s32.totalorder %v776, 0
        %v779 = vsel %vm777, 1.0, 0.0
        %v780 = vsel %vm778, 1.0, 0.0
        %vm781 = vcmp.eq.s32.totalorder %v775, 1
        %vm782 = vcmp.eq.s32.totalorder %v776, 1
        %v783 = vsel %vm781, 1.0, 0.0
        %v784 = vsel %vm782, 1.0, 0.0
        %vm785 = vcmask 64512
        %v787 = vsel %vm785, %v783, 0
        %v790 = vsel %vm785, %v784, 0
        %792 = vmatprep.subr.mxu0 0.0
        %793 = vmatpush1.msra.mxu0 %v768
        %794 = vmatprep.subr.mxu0 0.0
        %795 = vmatpush1.msra.mxu0 0.0
        %796 = vmatprep.subr.mxu0 0.0
        %797 = vmatpush1.msra.mxu0 0.0
        %798 = vmatprep.subr.mxu0 0.0
        %799 = vmatpush1.msra.mxu0 0.0
        %800 = vmatprep.subr.mxu0 0.0
        %801 = vmatpush1.msra.mxu0 0.0
        %802 = vmatprep.subr.mxu0 0.0
        %803 = vmatpush1.msra.mxu0 0.0
        %804 = vmatprep.subr.mxu0 0.0
        %805 = vmatpush1.msra.mxu0 0.0
        %806 = vmatprep.subr.mxu0 0.0
        %807 = vmatpush1.msra.mxu0 0.0
        %808 = vmatprep.subr.mxu0 0.0
        %809 = vmatpush1.msra.mxu0 0.0
        %810 = vmatprep.subr.mxu0 0.0
        %811 = vmatpush1.msra.mxu0 0.0
        %812 = vmatprep.subr.mxu0 0.0
        %813 = vmatpush1.msra.mxu0 0.0
        %814 = vmatprep.subr.mxu0 0.0
        %815 = vmatpush1.msra.mxu0 0.0
        %816 = vmatprep.subr.mxu0 0.0
        %817 = vmatpush1.msra.mxu0 0.0
        %818 = vmatprep.subr.mxu0 0.0
        %819 = vmatpush1.msra.mxu0 0.0
        %820 = vmatprep.subr.mxu0 0.0
        %821 = vmatpush1.msra.mxu0 0.0
        %822 = vmatprep.subr.mxu0 0.0
        %823 = vmatpush1.msra.mxu0 0.0
        %824 = vmatprep.subr.mxu0 0.0
        %825 = vmatpush1.msra.mxu0 0.0
        %826 = vmatprep.subr.mxu0 0.0
        %827 = vmatpush1.msra.mxu0 0.0
        %828 = vmatprep.subr.mxu0 0.0
        %829 = vmatpush1.msra.mxu0 0.0
        %830 = vmatprep.subr.mxu0 0.0
        %831 = vmatpush1.msra.mxu0 0.0
        %832 = vmatprep.subr.mxu0 0.0
        %833 = vmatpush1.msra.mxu0 0.0
        %834 = vmatprep.subr.mxu0 0.0
        %835 = vmatpush1.msra.mxu0 0.0
        %836 = vmatprep.subr.mxu0 0.0
        %837 = vmatpush1.msra.mxu0 0.0
        %838 = vmatprep.subr.mxu0 0.0
        %839 = vmatpush1.msra.mxu0 0.0
        %840 = vmatprep.subr.mxu0 0.0
        %841 = vmatpush1.msra.mxu0 0.0
        %842 = vmatprep.subr.mxu0 0.0
        %843 = vmatpush1.msra.mxu0 0.0
        %844 = vmatprep.subr.mxu0 0.0
        %845 = vmatpush1.msra.mxu0 0.0
        %846 = vmatprep.subr.mxu0 0.0
        %847 = vmatpush1.msra.mxu0 0.0
        %848 = vmatprep.subr.mxu0 0.0
        %849 = vmatpush1.msra.mxu0 0.0
        %850 = vmatprep.subr.mxu0 0.0
        %851 = vmatpush1.msra.mxu0 0.0
        %852 = vmatprep.subr.mxu0 0.0
        %853 = vmatpush1.msra.mxu0 0.0
        %854 = vmatprep.subr.mxu0 0.0
        %855 = vmatpush1.msra.mxu0 0.0
        %856 = vmatprep.mubr.f32.mxu0 0.0
        %857 = vmatmul.mubr.f32.gmra.mrb[0].mxu0 %v787
        %v858 = vpop.f32.mrb[0].mxu0
        %v859 = vadd.f32 0.0, %v858
        %v860 = vpop.f32.mrb[0].mxu0
        %861 = vmatprep.mubr.f32.mxu0 0.0
        %862 = vmatmul.mubr.f32.gmra.mrb[0].mxu0 %v790
        %v863 = vpop.f32.mrb[0].mxu0
        %v864 = vadd.f32 0.0, %v863
        %v865 = vpop.f32.mrb[0].mxu0
        %866 = vdwg.mxu0
        %v868 = vsel %vm785, %v779, 0
        %v871 = vsel %vm785, %v780, 0
        %873 = vmatprep.subr.mxu0 0.0
        %874 = vmatpush1.msra.mxu0 %v766
        %875 = vmatprep.subr.mxu0 0.0
        %876 = vmatpush1.msra.mxu0 0.0
        %877 = vmatprep.subr.mxu0 0.0
        %878 = vmatpush1.msra.mxu0 0.0
        %879 = vmatprep.subr.mxu0 0.0
        %880 = vmatpush1.msra.mxu0 0.0
        %881 = vmatprep.subr.mxu0 0.0
        %882 = vmatpush1.msra.mxu0 0.0
        %883 = vmatprep.subr.mxu0 0.0
        %884 = vmatpush1.msra.mxu0 0.0
        %885 = vmatprep.subr.mxu0 0.0
        %886 = vmatpush1.msra.mxu0 0.0
        %887 = vmatprep.subr.mxu0 0.0
        %888 = vmatpush1.msra.mxu0 0.0
        %889 = vmatprep.subr.mxu0 0.0
        %890 = vmatpush1.msra.mxu0 0.0
        %891 = vmatprep.subr.mxu0 0.0
        %892 = vmatpush1.msra.mxu0 0.0
        %893 = vmatprep.subr.mxu0 0.0
        %894 = vmatpush1.msra.mxu0 0.0
        %895 = vmatprep.subr.mxu0 0.0
        %896 = vmatpush1.msra.mxu0 0.0
        %897 = vmatprep.subr.mxu0 0.0
        %898 = vmatpush1.msra.mxu0 0.0
        %899 = vmatprep.subr.mxu0 0.0
        %900 = vmatpush1.msra.mxu0 0.0
        %901 = vmatprep.subr.mxu0 0.0
        %902 = vmatpush1.msra.mxu0 0.0
        %903 = vmatprep.subr.mxu0 0.0
        %904 = vmatpush1.msra.mxu0 0.0
        %905 = vmatprep.subr.mxu0 0.0
        %906 = vmatpush1.msra.mxu0 0.0
        %907 = vmatprep.subr.mxu0 0.0
        %908 = vmatpush1.msra.mxu0 0.0
        %909 = vmatprep.subr.mxu0 0.0
        %910 = vmatpush1.msra.mxu0 0.0
        %911 = vmatprep.subr.mxu0 0.0
        %912 = vmatpush1.msra.mxu0 0.0
        %913 = vmatprep.subr.mxu0 0.0
        %914 = vmatpush1.msra.mxu0 0.0
        %915 = vmatprep.subr.mxu0 0.0
        %916 = vmatpush1.msra.mxu0 0.0
        %917 = vmatprep.subr.mxu0 0.0
        %918 = vmatpush1.msra.mxu0 0.0
        %919 = vmatprep.subr.mxu0 0.0
        %920 = vmatpush1.msra.mxu0 0.0
        %921 = vmatprep.subr.mxu0 0.0
        %922 = vmatpush1.msra.mxu0 0.0
        %923 = vmatprep.subr.mxu0 0.0
        %924 = vmatpush1.msra.mxu0 0.0
        %925 = vmatprep.subr.mxu0 0.0
        %926 = vmatpush1.msra.mxu0 0.0
        %927 = vmatprep.subr.mxu0 0.0
        %928 = vmatpush1.msra.mxu0 0.0
        %929 = vmatprep.subr.mxu0 0.0
        %930 = vmatpush1.msra.mxu0 0.0
        %931 = vmatprep.subr.mxu0 0.0
        %932 = vmatpush1.msra.mxu0 0.0
        %933 = vmatprep.subr.mxu0 0.0
        %934 = vmatpush1.msra.mxu0 0.0
        %935 = vmatprep.subr.mxu0 0.0
        %936 = vmatpush1.msra.mxu0 0.0
        %937 = vmatprep.mubr.f32.mxu0 0.0
        %938 = vmatmul.mubr.f32.gmra.mrb[0].mxu0 %v868
        %v939 = vpop.f32.mrb[0].mxu0
        %v940 = vadd.f32 %v859, %v939
        %v941 = vpop.f32.mrb[0].mxu0
        %942 = vmatprep.mubr.f32.mxu0 0.0
        %943 = vmatmul.mubr.f32.gmra.mrb[0].mxu0 %v871
        %v944 = vpop.f32.mrb[0].mxu0
        %v945 = vadd.f32 %v864, %v944
        %v946 = vpop.f32.mrb[0].mxu0
        %947 = vdwg.mxu0
        %v948 = vld [vmem:[%s3] sm:$0xff]
        %v949 = vld [vmem:[%s3 + $0x8] sm:$0xff]
        %v950 = vld [vmem:[%s3 + $0x10] sm:$0xff]
        %v951 = vld [vmem:[%s3 + $0x18] sm:$0xff]
        %v952 = vld [vmem:[%s3 + $0x20] sm:$0xff]
        %v953 = vld [vmem:[%s3 + $0x28] sm:$0xff]
        %v954 = vld [vmem:[%s3 + $0x30] sm:$0xff]
        %v955 = vld [vmem:[%s3 + $0x38] sm:$0xff]
        %v956 = vld [vmem:[%s3 + $0x40] sm:$0xff]
        %v957 = vld [vmem:[%s3 + $0x48] sm:$0xff]
        %v958 = vld [vmem:[%s3 + $0x50] sm:$0xff]
        %v959 = vld [vmem:[%s3 + $0x58] sm:$0xff]
        %v960 = vld [vmem:[%s3 + $0x60] sm:$0xff]
        %v961 = vld [vmem:[%s3 + $0x68] sm:$0xff]
        %v962 = vld [vmem:[%s3 + $0x70] sm:$0xff]
        %v963 = vld [vmem:[%s3 + $0x78] sm:$0xff]
        %v966 = vrot.slane %v940, 7
        %v967 = vrot.slane %v945, 7
        %v968 = vsel %vm336, %v966, %v967
        %v971 = vsel %vm336, 0.0, %v966
        %s972 = scalar_lea.vmem %s3, 128
        %v973 = vld [vmem:[%s972] sm:$0xff]
        %v974 = vld [vmem:[%s972 + $0x8] sm:$0xff]
        %v975 = vld [vmem:[%s972 + $0x10] sm:$0xff]
        %v976 = vld [vmem:[%s972 + $0x18] sm:$0xff]
        %v977 = vld [vmem:[%s972 + $0x20] sm:$0xff]
        %v978 = vld [vmem:[%s972 + $0x28] sm:$0xff]
        %v979 = vld [vmem:[%s972 + $0x30] sm:$0xff]
        %v980 = vld [vmem:[%s972 + $0x38] sm:$0xff]
        %v981 = vld [vmem:[%s972 + $0x40] sm:$0xff]
        %v982 = vld [vmem:[%s972 + $0x48] sm:$0xff]
        %v983 = vld [vmem:[%s972 + $0x50] sm:$0xff]
        %v984 = vld [vmem:[%s972 + $0x58] sm:$0xff]
        %v985 = vld [vmem:[%s972 + $0x60] sm:$0xff]
        %v986 = vld [vmem:[%s972 + $0x68] sm:$0xff]
        %v987 = vld [vmem:[%s972 + $0x70] sm:$0xff]
        %v988 = vld [vmem:[%s972 + $0x78] sm:$0xff]
        %s989 = scalar_lea.vmem %s3, 256
        %v990 = vld [vmem:[%s989] sm:$0xff]
        %v991 = vld [vmem:[%s989 + $0x8] sm:$0xff]
        %v992 = vld [vmem:[%s989 + $0x10] sm:$0xff]
        %v993 = vld [vmem:[%s989 + $0x18] sm:$0xff]
        %v994 = vld [vmem:[%s989 + $0x20] sm:$0xff]
        %v995 = vld [vmem:[%s989 + $0x28] sm:$0xff]
        %v996 = vld [vmem:[%s989 + $0x30] sm:$0xff]
        %v997 = vld [vmem:[%s989 + $0x38] sm:$0xff]
        %v998 = vld [vmem:[%s989 + $0x40] sm:$0xff]
        %v999 = vld [vmem:[%s989 + $0x48] sm:$0xff]
        %v1000 = vld [vmem:[%s989 + $0x50] sm:$0xff]
        %v1001 = vld [vmem:[%s989 + $0x58] sm:$0xff]
        %v1002 = vld [vmem:[%s989 + $0x60] sm:$0xff]
        %v1003 = vld [vmem:[%s989 + $0x68] sm:$0xff]
        %v1004 = vld [vmem:[%s989 + $0x70] sm:$0xff]
        %v1005 = vld [vmem:[%s989 + $0x78] sm:$0xff]
        %v1006 = vadd.f32 %v973, %v990
        %v1007 = vadd.f32 %v974, %v991
        %v1008 = vadd.f32 %v975, %v992
        %v1009 = vadd.f32 %v976, %v993
        %v1010 = vadd.f32 %v977, %v994
        %v1011 = vadd.f32 %v978, %v995
        %v1012 = vadd.f32 %v979, %v996
        %v1013 = vadd.f32 %v980, %v997
        %v1014 = vadd.f32 %v981, %v998
        %v1015 = vadd.f32 %v982, %v999
        %v1016 = vadd.f32 %v983, %v1000
        %v1017 = vadd.f32 %v984, %v1001
        %v1018 = vadd.f32 %v985, %v1002
        %v1019 = vadd.f32 %v986, %v1003
        %v1020 = vadd.f32 %v987, %v1004
        %v1021 = vadd.f32 %v988, %v1005
        %1022 = vmatprep.subr.mxu0 0.0
        %1023 = vmatpush1.msra.mxu0 %v1006
        %1024 = vmatprep.subr.mxu0 0.0
        %1025 = vmatpush1.msra.mxu0 %v1007
        %1026 = vmatprep.subr.mxu0 0.0
        %1027 = vmatpush1.msra.mxu0 %v1008
        %1028 = vmatprep.subr.mxu0 0.0
        %1029 = vmatpush1.msra.mxu0 %v1009
        %1030 = vmatprep.subr.mxu0 0.0
        %1031 = vmatpush1.msra.mxu0 %v1010
        %1032 = vmatprep.subr.mxu0 0.0
        %1033 = vmatpush1.msra.mxu0 %v1011
        %1034 = vmatprep.subr.mxu0 0.0
        %1035 = vmatpush1.msra.mxu0 %v1012
        %1036 = vmatprep.subr.mxu0 0.0
        %1037 = vmatpush1.msra.mxu0 %v1013
        %1038 = vmatprep.subr.mxu0 0.0
        %1039 = vmatpush1.msra.mxu0 %v1014
        %1040 = vmatprep.subr.mxu0 0.0
        %1041 = vmatpush1.msra.mxu0 %v1015
        %1042 = vmatprep.subr.mxu0 0.0
        %1043 = vmatpush1.msra.mxu0 %v1016
        %1044 = vmatprep.subr.mxu0 0.0
        %1045 = vmatpush1.msra.mxu0 %v1017
        %1046 = vmatprep.subr.mxu0 0.0
        %1047 = vmatpush1.msra.mxu0 %v1018
        %1048 = vmatprep.subr.mxu0 0.0
        %1049 = vmatpush1.msra.mxu0 %v1019
        %1050 = vmatprep.subr.mxu0 0.0
        %1051 = vmatpush1.msra.mxu0 %v1020
        %1052 = vmatprep.subr.mxu0 0.0
        %1053 = vmatpush1.msra.mxu0 %v1021
        %1054 = vmatprep.subr.mxu0 0.0
        %1055 = vmatpush1.msra.mxu0 0.0
        %1056 = vmatprep.subr.mxu0 0.0
        %1057 = vmatpush1.msra.mxu0 0.0
        %1058 = vmatprep.subr.mxu0 0.0
        %1059 = vmatpush1.msra.mxu0 0.0
        %1060 = vmatprep.subr.mxu0 0.0
        %1061 = vmatpush1.msra.mxu0 0.0
        %1062 = vmatprep.subr.mxu0 0.0
        %1063 = vmatpush1.msra.mxu0 0.0
        %1064 = vmatprep.subr.mxu0 0.0
        %1065 = vmatpush1.msra.mxu0 0.0
        %1066 = vmatprep.subr.mxu0 0.0
        %1067 = vmatpush1.msra.mxu0 0.0
        %1068 = vmatprep.subr.mxu0 0.0
        %1069 = vmatpush1.msra.mxu0 0.0
        %1070 = vmatprep.subr.mxu0 0.0
        %1071 = vmatpush1.msra.mxu0 0.0
        %1072 = vmatprep.subr.mxu0 0.0
        %1073 = vmatpush1.msra.mxu0 0.0
        %1074 = vmatprep.subr.mxu0 0.0
        %1075 = vmatpush1.msra.mxu0 0.0
        %1076 = vmatprep.subr.mxu0 0.0
        %1077 = vmatpush1.msra.mxu0 0.0
        %1078 = vmatprep.subr.mxu0 0.0
        %1079 = vmatpush1.msra.mxu0 0.0
        %1080 = vmatprep.subr.mxu0 0.0
        %1081 = vmatpush1.msra.mxu0 0.0
        %1082 = vmatprep.subr.mxu0 0.0
        %1083 = vmatpush1.msra.mxu0 0.0
        %1084 = vmatprep.subr.mxu0 0.0
        %1085 = vmatpush1.msra.mxu0 0.0
        %1086 = vmatprep.mubr.f32.mxu0 0.0
        %1087 = vmatmul.mubr.f32.gmra.mrb[0].mxu0 %v940
        %v1088 = vpop.f32.mrb[0].mxu0
        %v1089 = vadd.f32 0.0, %v1088
        %v1090 = vpop.f32.mrb[0].mxu0
        %1091 = vmatprep.mubr.f32.mxu0 0.0
        %1092 = vmatmul.mubr.f32.gmra.mrb[0].mxu0 %v945
        %v1093 = vpop.f32.mrb[0].mxu0
        %v1094 = vadd.f32 0.0, %v1093
        %v1095 = vpop.f32.mrb[0].mxu0
        %1096 = vdwg.mxu0
        %1097 = vmatprep.subr.mxu0 0.0
        %1098 = vmatpush1.msra.mxu0 %v948
        %1099 = vmatprep.subr.mxu0 0.0
        %1100 = vmatpush1.msra.mxu0 %v949
        %1101 = vmatprep.subr.mxu0 0.0
        %1102 = vmatpush1.msra.mxu0 %v950
        %1103 = vmatprep.subr.mxu0 0.0
        %1104 = vmatpush1.msra.mxu0 %v951
        %1105 = vmatprep.subr.mxu0 0.0
        %1106 = vmatpush1.msra.mxu0 %v952
        %1107 = vmatprep.subr.mxu0 0.0
        %1108 = vmatpush1.msra.mxu0 %v953
        %1109 = vmatprep.subr.mxu0 0.0
        %1110 = vmatpush1.msra.mxu0 %v954
        %1111 = vmatprep.subr.mxu0 0.0
        %1112 = vmatpush1.msra.mxu0 %v955
        %1113 = vmatprep.subr.mxu0 0.0
        %1114 = vmatpush1.msra.mxu0 %v956
        %1115 = vmatprep.subr.mxu0 0.0
        %1116 = vmatpush1.msra.mxu0 %v957
        %1117 = vmatprep.subr.mxu0 0.0
        %1118 = vmatpush1.msra.mxu0 %v958
        %1119 = vmatprep.subr.mxu0 0.0
        %1120 = vmatpush1.msra.mxu0 %v959
        %1121 = vmatprep.subr.mxu0 0.0
        %1122 = vmatpush1.msra.mxu0 %v960
        %1123 = vmatprep.subr.mxu0 0.0
        %1124 = vmatpush1.msra.mxu0 %v961
        %1125 = vmatprep.subr.mxu0 0.0
        %1126 = vmatpush1.msra.mxu0 %v962
        %1127 = vmatprep.subr.mxu0 0.0
        %1128 = vmatpush1.msra.mxu0 %v963
        %1129 = vmatprep.subr.mxu0 0.0
        %1130 = vmatpush1.msra.mxu0 0.0
        %1131 = vmatprep.subr.mxu0 0.0
        %1132 = vmatpush1.msra.mxu0 0.0
        %1133 = vmatprep.subr.mxu0 0.0
        %1134 = vmatpush1.msra.mxu0 0.0
        %1135 = vmatprep.subr.mxu0 0.0
        %1136 = vmatpush1.msra.mxu0 0.0
        %1137 = vmatprep.subr.mxu0 0.0
        %1138 = vmatpush1.msra.mxu0 0.0
        %1139 = vmatprep.subr.mxu0 0.0
        %1140 = vmatpush1.msra.mxu0 0.0
        %1141 = vmatprep.subr.mxu0 0.0
        %1142 = vmatpush1.msra.mxu0 0.0
        %1143 = vmatprep.subr.mxu0 0.0
        %1144 = vmatpush1.msra.mxu0 0.0
        %1145 = vmatprep.subr.mxu0 0.0
        %1146 = vmatpush1.msra.mxu0 0.0
        %1147 = vmatprep.subr.mxu0 0.0
        %1148 = vmatpush1.msra.mxu0 0.0
        %1149 = vmatprep.subr.mxu0 0.0
        %1150 = vmatpush1.msra.mxu0 0.0
        %1151 = vmatprep.subr.mxu0 0.0
        %1152 = vmatpush1.msra.mxu0 0.0
        %1153 = vmatprep.subr.mxu0 0.0
        %1154 = vmatpush1.msra.mxu0 0.0
        %1155 = vmatprep.subr.mxu0 0.0
        %1156 = vmatpush1.msra.mxu0 0.0
        %1157 = vmatprep.subr.mxu0 0.0
        %1158 = vmatpush1.msra.mxu0 0.0
        %1159 = vmatprep.subr.mxu0 0.0
        %1160 = vmatpush1.msra.mxu0 0.0
        %1161 = vmatprep.mubr.f32.mxu0 0.0
        %1162 = vmatmul.mubr.f32.gmra.mrb[0].mxu0 %v971
        %v1163 = vpop.f32.mrb[0].mxu0
        %v1164 = vadd.f32 %v1089, %v1163
        %v1165 = vpop.f32.mrb[0].mxu0
        %1166 = vmatprep.mubr.f32.mxu0 0.0
        %1167 = vmatmul.mubr.f32.gmra.mrb[0].mxu0 %v968
        %v1168 = vpop.f32.mrb[0].mxu0
        %v1169 = vadd.f32 %v1094, %v1168
        %v1170 = vpop.f32.mrb[0].mxu0
        %1171 = vdwg.mxu0
        %v1172 = vld [vmem:[%s4] sm:$0x1]
        %v1174 = vlaneseq
        %v1175 = vshrl.u32 %v1174, 7
        %v1176 = vsub.s32 0, %v1175
        %v1177 = vrot.slane %v1172, %v1176
        %v1179 = vadd.f32 %v1164, %v1177
        %v1180 = vadd.f32 %v1169, %v1177
        %v1181 = vadd.f32 %v948, %v973
        %v1182 = vadd.f32 %v949, %v974
        %v1183 = vadd.f32 %v950, %v975
        %v1184 = vadd.f32 %v951, %v976
        %v1185 = vadd.f32 %v952, %v977
        %v1186 = vadd.f32 %v953, %v978
        %v1187 = vadd.f32 %v954, %v979
        %v1188 = vadd.f32 %v955, %v980
        %v1189 = vadd.f32 %v956, %v981
        %v1190 = vadd.f32 %v957, %v982
        %v1191 = vadd.f32 %v958, %v983
        %v1192 = vadd.f32 %v959, %v984
        %v1193 = vadd.f32 %v960, %v985
        %v1194 = vadd.f32 %v961, %v986
        %v1195 = vadd.f32 %v962, %v987
        %v1196 = vadd.f32 %v963, %v988
        %v1197 = vrot.slane %v940, 1
        %v1198 = vrot.slane %v945, 1
        %v1199 = vsel %vm621, %v1197, %v1198
        %v1202 = vsel %vm621, %v1198, 0.0
        %1203 = vmatprep.subr.mxu0 0.0
        %1204 = vmatpush1.msra.mxu0 %v990
        %1205 = vmatprep.subr.mxu0 0.0
        %1206 = vmatpush1.msra.mxu0 %v991
        %1207 = vmatprep.subr.mxu0 0.0
        %1208 = vmatpush1.msra.mxu0 %v992
        %1209 = vmatprep.subr.mxu0 0.0
        %1210 = vmatpush1.msra.mxu0 %v993
        %1211 = vmatprep.subr.mxu0 0.0
        %1212 = vmatpush1.msra.mxu0 %v994
        %1213 = vmatprep.subr.mxu0 0.0
        %1214 = vmatpush1.msra.mxu0 %v995
        %1215 = vmatprep.subr.mxu0 0.0
        %1216 = vmatpush1.msra.mxu0 %v996
        %1217 = vmatprep.subr.mxu0 0.0
        %1218 = vmatpush1.msra.mxu0 %v997
        %1219 = vmatprep.subr.mxu0 0.0
        %1220 = vmatpush1.msra.mxu0 %v998
        %1221 = vmatprep.subr.mxu0 0.0
        %1222 = vmatpush1.msra.mxu0 %v999
        %1223 = vmatprep.subr.mxu0 0.0
        %1224 = vmatpush1.msra.mxu0 %v1000
        %1225 = vmatprep.subr.mxu0 0.0
        %1226 = vmatpush1.msra.mxu0 %v1001
        %1227 = vmatprep.subr.mxu0 0.0
        %1228 = vmatpush1.msra.mxu0 %v1002
        %1229 = vmatprep.subr.mxu0 0.0
        %1230 = vmatpush1.msra.mxu0 %v1003
        %1231 = vmatprep.subr.mxu0 0.0
        %1232 = vmatpush1.msra.mxu0 %v1004
        %1233 = vmatprep.subr.mxu0 0.0
        %1234 = vmatpush1.msra.mxu0 %v1005
        %1235 = vmatprep.subr.mxu0 0.0
        %1236 = vmatpush1.msra.mxu0 0.0
        %1237 = vmatprep.subr.mxu0 0.0
        %1238 = vmatpush1.msra.mxu0 0.0
        %1239 = vmatprep.subr.mxu0 0.0
        %1240 = vmatpush1.msra.mxu0 0.0
        %1241 = vmatprep.subr.mxu0 0.0
        %1242 = vmatpush1.msra.mxu0 0.0
        %1243 = vmatprep.subr.mxu0 0.0
        %1244 = vmatpush1.msra.mxu0 0.0
        %1245 = vmatprep.subr.mxu0 0.0
        %1246 = vmatpush1.msra.mxu0 0.0
        %1247 = vmatprep.subr.mxu0 0.0
        %1248 = vmatpush1.msra.mxu0 0.0
        %1249 = vmatprep.subr.mxu0 0.0
        %1250 = vmatpush1.msra.mxu0 0.0
        %1251 = vmatprep.subr.mxu0 0.0
        %1252 = vmatpush1.msra.mxu0 0.0
        %1253 = vmatprep.subr.mxu0 0.0
        %1254 = vmatpush1.msra.mxu0 0.0
        %1255 = vmatprep.subr.mxu0 0.0
        %1256 = vmatpush1.msra.mxu0 0.0
        %1257 = vmatprep.subr.mxu0 0.0
        %1258 = vmatpush1.msra.mxu0 0.0
        %1259 = vmatprep.subr.mxu0 0.0
        %1260 = vmatpush1.msra.mxu0 0.0
        %1261 = vmatprep.subr.mxu0 0.0
        %1262 = vmatpush1.msra.mxu0 0.0
        %1263 = vmatprep.subr.mxu0 0.0
        %1264 = vmatpush1.msra.mxu0 0.0
        %1265 = vmatprep.subr.mxu0 0.0
        %1266 = vmatpush1.msra.mxu0 0.0
        %1267 = vmatprep.mubr.f32.mxu0 0.0
        %1268 = vmatmul.mubr.f32.gmra.mrb[0].mxu0 %v1199
        %v1269 = vpop.f32.mrb[0].mxu0
        %v1270 = vadd.f32 0.0, %v1269
        %v1271 = vpop.f32.mrb[0].mxu0
        %1272 = vmatprep.mubr.f32.mxu0 0.0
        %1273 = vmatmul.mubr.f32.gmra.mrb[0].mxu0 %v1202
        %v1274 = vpop.f32.mrb[0].mxu0
        %v1275 = vadd.f32 0.0, %v1274
        %v1276 = vpop.f32.mrb[0].mxu0
        %1277 = vdwg.mxu0
        %1278 = vmatprep.subr.mxu0 0.0
        %1279 = vmatpush1.msra.mxu0 %v1181
        %1280 = vmatprep.subr.mxu0 0.0
        %1281 = vmatpush1.msra.mxu0 %v1182
        %1282 = vmatprep.subr.mxu0 0.0
        %1283 = vmatpush1.msra.mxu0 %v1183
        %1284 = vmatprep.subr.mxu0 0.0
        %1285 = vmatpush1.msra.mxu0 %v1184
        %1286 = vmatprep.subr.mxu0 0.0
        %1287 = vmatpush1.msra.mxu0 %v1185
        %1288 = vmatprep.subr.mxu0 0.0
        %1289 = vmatpush1.msra.mxu0 %v1186
        %1290 = vmatprep.subr.mxu0 0.0
        %1291 = vmatpush1.msra.mxu0 %v1187
        %1292 = vmatprep.subr.mxu0 0.0
        %1293 = vmatpush1.msra.mxu0 %v1188
        %1294 = vmatprep.subr.mxu0 0.0
        %1295 = vmatpush1.msra.mxu0 %v1189
        %1296 = vmatprep.subr.mxu0 0.0
        %1297 = vmatpush1.msra.mxu0 %v1190
        %1298 = vmatprep.subr.mxu0 0.0
        %1299 = vmatpush1.msra.mxu0 %v1191
        %1300 = vmatprep.subr.mxu0 0.0
        %1301 = vmatpush1.msra.mxu0 %v1192
        %1302 = vmatprep.subr.mxu0 0.0
        %1303 = vmatpush1.msra.mxu0 %v1193
        %1304 = vmatprep.subr.mxu0 0.0
        %1305 = vmatpush1.msra.mxu0 %v1194
        %1306 = vmatprep.subr.mxu0 0.0
        %1307 = vmatpush1.msra.mxu0 %v1195
        %1308 = vmatprep.subr.mxu0 0.0
        %1309 = vmatpush1.msra.mxu0 %v1196
        %1310 = vmatprep.subr.mxu0 0.0
        %1311 = vmatpush1.msra.mxu0 0.0
        %1312 = vmatprep.subr.mxu0 0.0
        %1313 = vmatpush1.msra.mxu0 0.0
        %1314 = vmatprep.subr.mxu0 0.0
        %1315 = vmatpush1.msra.mxu0 0.0
        %1316 = vmatprep.subr.mxu0 0.0
        %1317 = vmatpush1.msra.mxu0 0.0
        %1318 = vmatprep.subr.mxu0 0.0
        %1319 = vmatpush1.msra.mxu0 0.0
        %1320 = vmatprep.subr.mxu0 0.0
        %1321 = vmatpush1.msra.mxu0 0.0
        %1322 = vmatprep.subr.mxu0 0.0
        %1323 = vmatpush1.msra.mxu0 0.0
        %1324 = vmatprep.subr.mxu0 0.0
        %1325 = vmatpush1.msra.mxu0 0.0
        %1326 = vmatprep.subr.mxu0 0.0
        %1327 = vmatpush1.msra.mxu0 0.0
        %1328 = vmatprep.subr.mxu0 0.0
        %1329 = vmatpush1.msra.mxu0 0.0
        %1330 = vmatprep.subr.mxu0 0.0
        %1331 = vmatpush1.msra.mxu0 0.0
        %1332 = vmatprep.subr.mxu0 0.0
        %1333 = vmatpush1.msra.mxu0 0.0
        %1334 = vmatprep.subr.mxu0 0.0
        %1335 = vmatpush1.msra.mxu0 0.0
        %1336 = vmatprep.subr.mxu0 0.0
        %1337 = vmatpush1.msra.mxu0 0.0
        %1338 = vmatprep.subr.mxu0 0.0
        %1339 = vmatpush1.msra.mxu0 0.0
        %1340 = vmatprep.subr.mxu0 0.0
        %1341 = vmatpush1.msra.mxu0 0.0
        %1342 = vmatprep.mubr.f32.mxu0 0.0
        %1343 = vmatmul.mubr.f32.gmra.mrb[0].mxu0 %v940
        %v1344 = vpop.f32.mrb[0].mxu0
        %v1345 = vadd.f32 %v1270, %v1344
        %v1346 = vpop.f32.mrb[0].mxu0
        %1347 = vmatprep.mubr.f32.mxu0 0.0
        %1348 = vmatmul.mubr.f32.gmra.mrb[0].mxu0 %v945
        %v1349 = vpop.f32.mrb[0].mxu0
        %v1350 = vadd.f32 %v1275, %v1349
        %v1351 = vpop.f32.mrb[0].mxu0
        %1352 = vdwg.mxu0
        %v1353 = vadd.f32 %v1345, %v1177
        %v1354 = vadd.f32 %v1350, %v1177
        %v1355 = vmax.f32 %v1179, 0.0
        %v1356 = vmax.f32 %v1180, 0.0
        %v1357 = vtanh.pop %v1355
        %v1358 = vtanh.pop %v1356
        %v1359 = vmax.f32 %v1353, 0.0
        %v1360 = vmax.f32 %v1354, 0.0
        %v1361 = vtanh.pop %v1359
        %v1362 = vtanh.pop %v1360
        %v1363 = vadd.s32 %v770, 16
        %v1364 = vadd.s32 %v770, 24
        %v1365 = vsub.s32 %v1363, %v774
        %v1366 = vsub.s32 %v1364, %v774
        %vm1367 = vcmp.eq.s32.totalorder %v1365, 0
        %vm1368 = vcmp.eq.s32.totalorder %v1366, 0
        %v1369 = vsel %vm1367, 1.0, 0.0
        %v1370 = vsel %vm1368, 1.0, 0.0
        %vm1371 = vcmp.eq.s32.totalorder %v1365, 1
        %vm1372 = vcmp.eq.s32.totalorder %v1366, 1
        %v1373 = vsel %vm1371, 1.0, 0.0
        %v1374 = vsel %vm1372, 1.0, 0.0
        %vm1375 = vcmask 130048
        %v1376 = vsel %vm1375, %v783, 0
        %v1378 = vsel %vm1375, %v784, 0
        %v1381 = vsel %vm1375, %v1373, 0
        %v1384 = vsel %vm1375, %v1374, 0
        %1386 = vmatprep.subr.mxu0 0.0
        %1387 = vmatpush1.msra.mxu0 %v1361
        %1388 = vmatprep.subr.mxu0 0.0
        %1389 = vmatpush1.msra.mxu0 %v1362
        %1390 = vmatprep.subr.mxu0 0.0
        %1391 = vmatpush1.msra.mxu0 0.0
        %1392 = vmatprep.subr.mxu0 0.0
        %1393 = vmatpush1.msra.mxu0 0.0
        %1394 = vmatprep.subr.mxu0 0.0
        %1395 = vmatpush1.msra.mxu0 0.0
        %1396 = vmatprep.subr.mxu0 0.0
        %1397 = vmatpush1.msra.mxu0 0.0
        %1398 = vmatprep.subr.mxu0 0.0
        %1399 = vmatpush1.msra.mxu0 0.0
        %1400 = vmatprep.subr.mxu0 0.0
        %1401 = vmatpush1.msra.mxu0 0.0
        %1402 = vmatprep.subr.mxu0 0.0
        %1403 = vmatpush1.msra.mxu0 0.0
        %1404 = vmatprep.subr.mxu0 0.0
        %1405 = vmatpush1.msra.mxu0 0.0
        %1406 = vmatprep.subr.mxu0 0.0
        %1407 = vmatpush1.msra.mxu0 0.0
        %1408 = vmatprep.subr.mxu0 0.0
        %1409 = vmatpush1.msra.mxu0 0.0
        %1410 = vmatprep.subr.mxu0 0.0
        %1411 = vmatpush1.msra.mxu0 0.0
        %1412 = vmatprep.subr.mxu0 0.0
        %1413 = vmatpush1.msra.mxu0 0.0
        %1414 = vmatprep.subr.mxu0 0.0
        %1415 = vmatpush1.msra.mxu0 0.0
        %1416 = vmatprep.subr.mxu0 0.0
        %1417 = vmatpush1.msra.mxu0 0.0
        %1418 = vmatprep.subr.mxu0 0.0
        %1419 = vmatpush1.msra.mxu0 0.0
        %1420 = vmatprep.subr.mxu0 0.0
        %1421 = vmatpush1.msra.mxu0 0.0
        %1422 = vmatprep.subr.mxu0 0.0
        %1423 = vmatpush1.msra.mxu0 0.0
        %1424 = vmatprep.subr.mxu0 0.0
        %1425 = vmatpush1.msra.mxu0 0.0
        %1426 = vmatprep.subr.mxu0 0.0
        %1427 = vmatpush1.msra.mxu0 0.0
        %1428 = vmatprep.subr.mxu0 0.0
        %1429 = vmatpush1.msra.mxu0 0.0
        %1430 = vmatprep.subr.mxu0 0.0
        %1431 = vmatpush1.msra.mxu0 0.0
        %1432 = vmatprep.subr.mxu0 0.0
        %1433 = vmatpush1.msra.mxu0 0.0
        %1434 = vmatprep.subr.mxu0 0.0
        %1435 = vmatpush1.msra.mxu0 0.0
        %1436 = vmatprep.subr.mxu0 0.0
        %1437 = vmatpush1.msra.mxu0 0.0
        %1438 = vmatprep.subr.mxu0 0.0
        %1439 = vmatpush1.msra.mxu0 0.0
        %1440 = vmatprep.subr.mxu0 0.0
        %1441 = vmatpush1.msra.mxu0 0.0
        %1442 = vmatprep.subr.mxu0 0.0
        %1443 = vmatpush1.msra.mxu0 0.0
        %1444 = vmatprep.subr.mxu0 0.0
        %1445 = vmatpush1.msra.mxu0 0.0
        %1446 = vmatprep.subr.mxu0 0.0
        %1447 = vmatpush1.msra.mxu0 0.0
        %1448 = vmatprep.subr.mxu0 0.0
        %1449 = vmatpush1.msra.mxu0 0.0
        %1450 = vmatprep.mubr.f32.mxu0 0.0
        %1451 = vmatmul.mubr.f32.gmra.mrb[0].mxu0 %v1376
        %v1452 = vpop.f32.mrb[0].mxu0
        %v1453 = vadd.f32 0.0, %v1452
        %v1454 = vpop.f32.mrb[0].mxu0
        %1455 = vmatprep.mubr.f32.mxu0 0.0
        %1456 = vmatmul.mubr.f32.gmra.mrb[0].mxu0 %v1378
        %v1457 = vpop.f32.mrb[0].mxu0
        %v1458 = vadd.f32 0.0, %v1457
        %v1459 = vpop.f32.mrb[0].mxu0
        %1460 = vmatprep.mubr.f32.mxu0 0.0
        %1461 = vmatmul.mubr.f32.gmra.mrb[0].mxu0 %v1381
        %v1462 = vpop.f32.mrb[0].mxu0
        %v1463 = vadd.f32 0.0, %v1462
        %v1464 = vpop.f32.mrb[0].mxu0
        %1465 = vmatprep.mubr.f32.mxu0 0.0
        %1466 = vmatmul.mubr.f32.gmra.mrb[0].mxu0 %v1384
        %v1467 = vpop.f32.mrb[0].mxu0
        %v1468 = vadd.f32 0.0, %v1467
        %v1469 = vpop.f32.mrb[0].mxu0
        %1470 = vdwg.mxu0
        %v1471 = vsel %vm1375, %v779, 0
        %v1473 = vsel %vm1375, %v780, 0
        %v1476 = vsel %vm1375, %v1369, 0
        %v1479 = vsel %vm1375, %v1370, 0
        %1481 = vmatprep.subr.mxu0 0.0
        %1482 = vmatpush1.msra.mxu0 %v1357
        %1483 = vmatprep.subr.mxu0 0.0
        %1484 = vmatpush1.msra.mxu0 %v1358
        %1485 = vmatprep.subr.mxu0 0.0
        %1486 = vmatpush1.msra.mxu0 0.0
        %1487 = vmatprep.subr.mxu0 0.0
        %1488 = vmatpush1.msra.mxu0 0.0
        %1489 = vmatprep.subr.mxu0 0.0
        %1490 = vmatpush1.msra.mxu0 0.0
        %1491 = vmatprep.subr.mxu0 0.0
        %1492 = vmatpush1.msra.mxu0 0.0
        %1493 = vmatprep.subr.mxu0 0.0
        %1494 = vmatpush1.msra.mxu0 0.0
        %1495 = vmatprep.subr.mxu0 0.0
        %1496 = vmatpush1.msra.mxu0 0.0
        %1497 = vmatprep.subr.mxu0 0.0
        %1498 = vmatpush1.msra.mxu0 0.0
        %1499 = vmatprep.subr.mxu0 0.0
        %1500 = vmatpush1.msra.mxu0 0.0
        %1501 = vmatprep.subr.mxu0 0.0
        %1502 = vmatpush1.msra.mxu0 0.0
        %1503 = vmatprep.subr.mxu0 0.0
        %1504 = vmatpush1.msra.mxu0 0.0
        %1505 = vmatprep.subr.mxu0 0.0
        %1506 = vmatpush1.msra.mxu0 0.0
        %1507 = vmatprep.subr.mxu0 0.0
        %1508 = vmatpush1.msra.mxu0 0.0
        %1509 = vmatprep.subr.mxu0 0.0
        %1510 = vmatpush1.msra.mxu0 0.0
        %1511 = vmatprep.subr.mxu0 0.0
        %1512 = vmatpush1.msra.mxu0 0.0
        %1513 = vmatprep.subr.mxu0 0.0
        %1514 = vmatpush1.msra.mxu0 0.0
        %1515 = vmatprep.subr.mxu0 0.0
        %1516 = vmatpush1.msra.mxu0 0.0
        %1517 = vmatprep.subr.mxu0 0.0
        %1518 = vmatpush1.msra.mxu0 0.0
        %1519 = vmatprep.subr.mxu0 0.0
        %1520 = vmatpush1.msra.mxu0 0.0
        %1521 = vmatprep.subr.mxu0 0.0
        %1522 = vmatpush1.msra.mxu0 0.0
        %1523 = vmatprep.subr.mxu0 0.0
        %1524 = vmatpush1.msra.mxu0 0.0
        %1525 = vmatprep.subr.mxu0 0.0
        %1526 = vmatpush1.msra.mxu0 0.0
        %1527 = vmatprep.subr.mxu0 0.0
        %1528 = vmatpush1.msra.mxu0 0.0
        %1529 = vmatprep.subr.mxu0 0.0
        %1530 = vmatpush1.msra.mxu0 0.0
        %1531 = vmatprep.subr.mxu0 0.0
        %1532 = vmatpush1.msra.mxu0 0.0
        %1533 = vmatprep.subr.mxu0 0.0
        %1534 = vmatpush1.msra.mxu0 0.0
        %1535 = vmatprep.subr.mxu0 0.0
        %1536 = vmatpush1.msra.mxu0 0.0
        %1537 = vmatprep.subr.mxu0 0.0
        %1538 = vmatpush1.msra.mxu0 0.0
        %1539 = vmatprep.subr.mxu0 0.0
        %1540 = vmatpush1.msra.mxu0 0.0
        %1541 = vmatprep.subr.mxu0 0.0
        %1542 = vmatpush1.msra.mxu0 0.0
        %1543 = vmatprep.subr.mxu0 0.0
        %1544 = vmatpush1.msra.mxu0 0.0
        %1545 = vmatprep.mubr.f32.mxu0 0.0
        %1546 = vmatmul.mubr.f32.gmra.mrb[0].mxu0 %v1471
        %v1547 = vpop.f32.mrb[0].mxu0
        %v1548 = vadd.f32 %v1453, %v1547
        %v1549 = vpop.f32.mrb[0].mxu0
        %1550 = vmatprep.mubr.f32.mxu0 0.0
        %1551 = vmatmul.mubr.f32.gmra.mrb[0].mxu0 %v1473
        %v1552 = vpop.f32.mrb[0].mxu0
        %v1553 = vadd.f32 %v1458, %v1552
        %v1554 = vpop.f32.mrb[0].mxu0
        %1555 = vmatprep.mubr.f32.mxu0 0.0
        %1556 = vmatmul.mubr.f32.gmra.mrb[0].mxu0 %v1476
        %v1557 = vpop.f32.mrb[0].mxu0
        %v1558 = vadd.f32 %v1463, %v1557
        %v1559 = vpop.f32.mrb[0].mxu0
        %1560 = vmatprep.mubr.f32.mxu0 0.0
        %1561 = vmatmul.mubr.f32.gmra.mrb[0].mxu0 %v1479
        %v1562 = vpop.f32.mrb[0].mxu0
        %v1563 = vadd.f32 %v1468, %v1562
        %v1564 = vpop.f32.mrb[0].mxu0
        %1565 = vdwg.mxu0
        %v1566 = vld [vmem:[%s5] sm:$0xff]
        %v1567 = vld [vmem:[%s5 + $0x8] sm:$0xff]
        %v1568 = vld [vmem:[%s5 + $0x10] sm:$0xff]
        %v1569 = vld [vmem:[%s5 + $0x18] sm:$0xff]
        %v1570 = vld [vmem:[%s5 + $0x20] sm:$0xff]
        %v1571 = vld [vmem:[%s5 + $0x28] sm:$0xff]
        %v1572 = vld [vmem:[%s5 + $0x30] sm:$0xff]
        %v1573 = vld [vmem:[%s5 + $0x38] sm:$0xff]
        %v1578 = vrot.slane %v1548, 7
        %v1579 = vrot.slane %v1553, 7
        %v1580 = vsel %vm336, %v1578, %v1579
        %v1581 = vrot.slane %v1558, 7
        %v1582 = vsel %vm336, %v1579, %v1581
        %v1583 = vrot.slane %v1563, 7
        %v1584 = vsel %vm336, %v1581, %v1583
        %v1586 = vsel %vm336, 0.0, %v1578
        %s1587 = scalar_lea.vmem %s5, 64
        %v1588 = vld [vmem:[%s1587] sm:$0xff]
        %v1589 = vld [vmem:[%s1587 + $0x8] sm:$0xff]
        %v1590 = vld [vmem:[%s1587 + $0x10] sm:$0xff]
        %v1591 = vld [vmem:[%s1587 + $0x18] sm:$0xff]
        %v1592 = vld [vmem:[%s1587 + $0x20] sm:$0xff]
        %v1593 = vld [vmem:[%s1587 + $0x28] sm:$0xff]
        %v1594 = vld [vmem:[%s1587 + $0x30] sm:$0xff]
        %v1595 = vld [vmem:[%s1587 + $0x38] sm:$0xff]
        %s1596 = scalar_lea.vmem %s5, 128
        %v1597 = vld [vmem:[%s1596] sm:$0xff]
        %v1598 = vld [vmem:[%s1596 + $0x8] sm:$0xff]
        %v1599 = vld [vmem:[%s1596 + $0x10] sm:$0xff]
        %v1600 = vld [vmem:[%s1596 + $0x18] sm:$0xff]
        %v1601 = vld [vmem:[%s1596 + $0x20] sm:$0xff]
        %v1602 = vld [vmem:[%s1596 + $0x28] sm:$0xff]
        %v1603 = vld [vmem:[%s1596 + $0x30] sm:$0xff]
        %v1604 = vld [vmem:[%s1596 + $0x38] sm:$0xff]
        %v1605 = vadd.f32 %v1588, %v1597
        %v1606 = vadd.f32 %v1589, %v1598
        %v1607 = vadd.f32 %v1590, %v1599
        %v1608 = vadd.f32 %v1591, %v1600
        %v1609 = vadd.f32 %v1592, %v1601
        %v1610 = vadd.f32 %v1593, %v1602
        %v1611 = vadd.f32 %v1594, %v1603
        %v1612 = vadd.f32 %v1595, %v1604
        %vm1613 = vcmask 523264
        %v1614 = vsel %vm1613, %v1548, 0
        %v1616 = vsel %vm1613, %v1553, 0
        %v1618 = vsel %vm1613, %v1558, 0
        %v1620 = vsel %vm1613, %v1563, 0
        %1622 = vmatprep.subr.mxu0 0.0
        %1623 = vmatpush1.msra.mxu0 %v1605
        %1624 = vmatprep.subr.mxu0 0.0
        %1625 = vmatpush1.msra.mxu0 %v1606
        %1626 = vmatprep.subr.mxu0 0.0
        %1627 = vmatpush1.msra.mxu0 %v1607
        %1628 = vmatprep.subr.mxu0 0.0
        %1629 = vmatpush1.msra.mxu0 %v1608
        %1630 = vmatprep.subr.mxu0 0.0
        %1631 = vmatpush1.msra.mxu0 %v1609
        %1632 = vmatprep.subr.mxu0 0.0
        %1633 = vmatpush1.msra.mxu0 %v1610
        %1634 = vmatprep.subr.mxu0 0.0
        %1635 = vmatpush1.msra.mxu0 %v1611
        %1636 = vmatprep.subr.mxu0 0.0
        %1637 = vmatpush1.msra.mxu0 %v1612
        %1638 = vmatprep.subr.mxu0 0.0
        %1639 = vmatpush1.msra.mxu0 0.0
        %1640 = vmatprep.subr.mxu0 0.0
        %1641 = vmatpush1.msra.mxu0 0.0
        %1642 = vmatprep.subr.mxu0 0.0
        %1643 = vmatpush1.msra.mxu0 0.0
        %1644 = vmatprep.subr.mxu0 0.0
        %1645 = vmatpush1.msra.mxu0 0.0
        %1646 = vmatprep.subr.mxu0 0.0
        %1647 = vmatpush1.msra.mxu0 0.0
        %1648 = vmatprep.subr.mxu0 0.0
        %1649 = vmatpush1.msra.mxu0 0.0
        %1650 = vmatprep.subr.mxu0 0.0
        %1651 = vmatpush1.msra.mxu0 0.0
        %1652 = vmatprep.subr.mxu0 0.0
        %1653 = vmatpush1.msra.mxu0 0.0
        %1654 = vmatprep.subr.mxu0 0.0
        %1655 = vmatpush1.msra.mxu0 0.0
        %1656 = vmatprep.subr.mxu0 0.0
        %1657 = vmatpush1.msra.mxu0 0.0
        %1658 = vmatprep.subr.mxu0 0.0
        %1659 = vmatpush1.msra.mxu0 0.0
        %1660 = vmatprep.subr.mxu0 0.0
        %1661 = vmatpush1.msra.mxu0 0.0
        %1662 = vmatprep.subr.mxu0 0.0
        %1663 = vmatpush1.msra.mxu0 0.0
        %1664 = vmatprep.subr.mxu0 0.0
        %1665 = vmatpush1.msra.mxu0 0.0
        %1666 = vmatprep.subr.mxu0 0.0
        %1667 = vmatpush1.msra.mxu0 0.0
        %1668 = vmatprep.subr.mxu0 0.0
        %1669 = vmatpush1.msra.mxu0 0.0
        %1670 = vmatprep.subr.mxu0 0.0
        %1671 = vmatpush1.msra.mxu0 0.0
        %1672 = vmatprep.subr.mxu0 0.0
        %1673 = vmatpush1.msra.mxu0 0.0
        %1674 = vmatprep.subr.mxu0 0.0
        %1675 = vmatpush1.msra.mxu0 0.0
        %1676 = vmatprep.subr.mxu0 0.0
        %1677 = vmatpush1.msra.mxu0 0.0
        %1678 = vmatprep.subr.mxu0 0.0
        %1679 = vmatpush1.msra.mxu0 0.0
        %1680 = vmatprep.subr.mxu0 0.0
        %1681 = vmatpush1.msra.mxu0 0.0
        %1682 = vmatprep.subr.mxu0 0.0
        %1683 = vmatpush1.msra.mxu0 0.0
        %1684 = vmatprep.subr.mxu0 0.0
        %1685 = vmatpush1.msra.mxu0 0.0
        %1686 = vmatprep.mubr.f32.mxu0 0.0
        %1687 = vmatmul.mubr.f32.gmra.mrb[0].mxu0 %v1614
        %v1688 = vpop.f32.mrb[0].mxu0
        %v1689 = vadd.f32 0.0, %v1688
        %v1690 = vpop.f32.mrb[0].mxu0
        %1691 = vmatprep.mubr.f32.mxu0 0.0
        %1692 = vmatmul.mubr.f32.gmra.mrb[0].mxu0 %v1616
        %v1693 = vpop.f32.mrb[0].mxu0
        %v1694 = vadd.f32 0.0, %v1693
        %v1695 = vpop.f32.mrb[0].mxu0
        %1696 = vmatprep.mubr.f32.mxu0 0.0
        %1697 = vmatmul.mubr.f32.gmra.mrb[0].mxu0 %v1618
        %v1698 = vpop.f32.mrb[0].mxu0
        %v1699 = vadd.f32 0.0, %v1698
        %v1700 = vpop.f32.mrb[0].mxu0
        %1701 = vmatprep.mubr.f32.mxu0 0.0
        %1702 = vmatmul.mubr.f32.gmra.mrb[0].mxu0 %v1620
        %v1703 = vpop.f32.mrb[0].mxu0
        %v1704 = vadd.f32 0.0, %v1703
        %v1705 = vpop.f32.mrb[0].mxu0
        %1706 = vdwg.mxu0
        %v1708 = vsel %vm1613, %v1586, 0
        %v1710 = vsel %vm1613, %v1580, 0
        %v1712 = vsel %vm1613, %v1582, 0
        %v1714 = vsel %vm1613, %v1584, 0
        %1716 = vmatprep.subr.mxu0 0.0
        %1717 = vmatpush1.msra.mxu0 %v1566
        %1718 = vmatprep.subr.mxu0 0.0
        %1719 = vmatpush1.msra.mxu0 %v1567
        %1720 = vmatprep.subr.mxu0 0.0
        %1721 = vmatpush1.msra.mxu0 %v1568
        %1722 = vmatprep.subr.mxu0 0.0
        %1723 = vmatpush1.msra.mxu0 %v1569
        %1724 = vmatprep.subr.mxu0 0.0
        %1725 = vmatpush1.msra.mxu0 %v1570
        %1726 = vmatprep.subr.mxu0 0.0
        %1727 = vmatpush1.msra.mxu0 %v1571
        %1728 = vmatprep.subr.mxu0 0.0
        %1729 = vmatpush1.msra.mxu0 %v1572
        %1730 = vmatprep.subr.mxu0 0.0
        %1731 = vmatpush1.msra.mxu0 %v1573
        %1732 = vmatprep.subr.mxu0 0.0
        %1733 = vmatpush1.msra.mxu0 0.0
        %1734 = vmatprep.subr.mxu0 0.0
        %1735 = vmatpush1.msra.mxu0 0.0
        %1736 = vmatprep.subr.mxu0 0.0
        %1737 = vmatpush1.msra.mxu0 0.0
        %1738 = vmatprep.subr.mxu0 0.0
        %1739 = vmatpush1.msra.mxu0 0.0
        %1740 = vmatprep.subr.mxu0 0.0
        %1741 = vmatpush1.msra.mxu0 0.0
        %1742 = vmatprep.subr.mxu0 0.0
        %1743 = vmatpush1.msra.mxu0 0.0
        %1744 = vmatprep.subr.mxu0 0.0
        %1745 = vmatpush1.msra.mxu0 0.0
        %1746 = vmatprep.subr.mxu0 0.0
        %1747 = vmatpush1.msra.mxu0 0.0
        %1748 = vmatprep.subr.mxu0 0.0
        %1749 = vmatpush1.msra.mxu0 0.0
        %1750 = vmatprep.subr.mxu0 0.0
        %1751 = vmatpush1.msra.mxu0 0.0
        %1752 = vmatprep.subr.mxu0 0.0
        %1753 = vmatpush1.msra.mxu0 0.0
        %1754 = vmatprep.subr.mxu0 0.0
        %1755 = vmatpush1.msra.mxu0 0.0
        %1756 = vmatprep.subr.mxu0 0.0
        %1757 = vmatpush1.msra.mxu0 0.0
        %1758 = vmatprep.subr.mxu0 0.0
        %1759 = vmatpush1.msra.mxu0 0.0
        %1760 = vmatprep.subr.mxu0 0.0
        %1761 = vmatpush1.msra.mxu0 0.0
        %1762 = vmatprep.subr.mxu0 0.0
        %1763 = vmatpush1.msra.mxu0 0.0
        %1764 = vmatprep.subr.mxu0 0.0
        %1765 = vmatpush1.msra.mxu0 0.0
        %1766 = vmatprep.subr.mxu0 0.0
        %1767 = vmatpush1.msra.mxu0 0.0
        %1768 = vmatprep.subr.mxu0 0.0
        %1769 = vmatpush1.msra.mxu0 0.0
        %1770 = vmatprep.subr.mxu0 0.0
        %1771 = vmatpush1.msra.mxu0 0.0
        %1772 = vmatprep.subr.mxu0 0.0
        %1773 = vmatpush1.msra.mxu0 0.0
        %1774 = vmatprep.subr.mxu0 0.0
        %1775 = vmatpush1.msra.mxu0 0.0
        %1776 = vmatprep.subr.mxu0 0.0
        %1777 = vmatpush1.msra.mxu0 0.0
        %1778 = vmatprep.subr.mxu0 0.0
        %1779 = vmatpush1.msra.mxu0 0.0
        %1780 = vmatprep.mubr.f32.mxu0 0.0
        %1781 = vmatmul.mubr.f32.gmra.mrb[0].mxu0 %v1708
        %v1782 = vpop.f32.mrb[0].mxu0
        %v1783 = vadd.f32 %v1689, %v1782
        %v1784 = vpop.f32.mrb[0].mxu0
        %1785 = vmatprep.mubr.f32.mxu0 0.0
        %1786 = vmatmul.mubr.f32.gmra.mrb[0].mxu0 %v1710
        %v1787 = vpop.f32.mrb[0].mxu0
        %v1788 = vadd.f32 %v1694, %v1787
        %v1789 = vpop.f32.mrb[0].mxu0
        %1790 = vmatprep.mubr.f32.mxu0 0.0
        %1791 = vmatmul.mubr.f32.gmra.mrb[0].mxu0 %v1712
        %v1792 = vpop.f32.mrb[0].mxu0
        %v1793 = vadd.f32 %v1699, %v1792
        %v1794 = vpop.f32.mrb[0].mxu0
        %1795 = vmatprep.mubr.f32.mxu0 0.0
        %1796 = vmatmul.mubr.f32.gmra.mrb[0].mxu0 %v1714
        %v1797 = vpop.f32.mrb[0].mxu0
        %v1798 = vadd.f32 %v1704, %v1797
        %v1799 = vpop.f32.mrb[0].mxu0
        %1800 = vdwg.mxu0
        %v1801 = vld [vmem:[%s6] sm:$0x1]
        %v1803 = vlaneseq
        %v1804 = vshrl.u32 %v1803, 7
        %v1805 = vsub.s32 0, %v1804
        %v1806 = vrot.slane %v1801, %v1805
        %v1808 = vadd.f32 %v1783, %v1806
        %v1809 = vadd.f32 %v1788, %v1806
        %v1810 = vadd.f32 %v1793, %v1806
        %v1811 = vadd.f32 %v1798, %v1806
        %v1812 = vadd.f32 %v1566, %v1588
        %v1813 = vadd.f32 %v1567, %v1589
        %v1814 = vadd.f32 %v1568, %v1590
        %v1815 = vadd.f32 %v1569, %v1591
        %v1816 = vadd.f32 %v1570, %v1592
        %v1817 = vadd.f32 %v1571, %v1593
        %v1818 = vadd.f32 %v1572, %v1594
        %v1819 = vadd.f32 %v1573, %v1595
        %v1820 = vrot.slane %v1548, 1
        %v1821 = vrot.slane %v1553, 1
        %v1822 = vsel %vm621, %v1820, %v1821
        %v1823 = vrot.slane %v1558, 1
        %v1824 = vsel %vm621, %v1821, %v1823
        %v1825 = vrot.slane %v1563, 1
        %v1826 = vsel %vm621, %v1823, %v1825
        %v1828 = vsel %vm621, %v1825, 0.0
        %v1829 = vsel %vm1613, %v1822, 0
        %v1831 = vsel %vm1613, %v1824, 0
        %v1833 = vsel %vm1613, %v1826, 0
        %v1836 = vsel %vm1613, %v1828, 0
        %1838 = vmatprep.subr.mxu0 0.0
        %1839 = vmatpush1.msra.mxu0 %v1597
        %1840 = vmatprep.subr.mxu0 0.0
        %1841 = vmatpush1.msra.mxu0 %v1598
        %1842 = vmatprep.subr.mxu0 0.0
        %1843 = vmatpush1.msra.mxu0 %v1599
        %1844 = vmatprep.subr.mxu0 0.0
        %1845 = vmatpush1.msra.mxu0 %v1600
        %1846 = vmatprep.subr.mxu0 0.0
        %1847 = vmatpush1.msra.mxu0 %v1601
        %1848 = vmatprep.subr.mxu0 0.0
        %1849 = vmatpush1.msra.mxu0 %v1602
        %1850 = vmatprep.subr.mxu0 0.0
        %1851 = vmatpush1.msra.mxu0 %v1603
        %1852 = vmatprep.subr.mxu0 0.0
        %1853 = vmatpush1.msra.mxu0 %v1604
        %1854 = vmatprep.subr.mxu0 0.0
        %1855 = vmatpush1.msra.mxu0 0.0
        %1856 = vmatprep.subr.mxu0 0.0
        %1857 = vmatpush1.msra.mxu0 0.0
        %1858 = vmatprep.subr.mxu0 0.0
        %1859 = vmatpush1.msra.mxu0 0.0
        %1860 = vmatprep.subr.mxu0 0.0
        %1861 = vmatpush1.msra.mxu0 0.0
        %1862 = vmatprep.subr.mxu0 0.0
        %1863 = vmatpush1.msra.mxu0 0.0
        %1864 = vmatprep.subr.mxu0 0.0
        %1865 = vmatpush1.msra.mxu0 0.0
        %1866 = vmatprep.subr.mxu0 0.0
        %1867 = vmatpush1.msra.mxu0 0.0
        %1868 = vmatprep.subr.mxu0 0.0
        %1869 = vmatpush1.msra.mxu0 0.0
        %1870 = vmatprep.subr.mxu0 0.0
        %1871 = vmatpush1.msra.mxu0 0.0
        %1872 = vmatprep.subr.mxu0 0.0
        %1873 = vmatpush1.msra.mxu0 0.0
        %1874 = vmatprep.subr.mxu0 0.0
        %1875 = vmatpush1.msra.mxu0 0.0
        %1876 = vmatprep.subr.mxu0 0.0
        %1877 = vmatpush1.msra.mxu0 0.0
        %1878 = vmatprep.subr.mxu0 0.0
        %1879 = vmatpush1.msra.mxu0 0.0
        %1880 = vmatprep.subr.mxu0 0.0
        %1881 = vmatpush1.msra.mxu0 0.0
        %1882 = vmatprep.subr.mxu0 0.0
        %1883 = vmatpush1.msra.mxu0 0.0
        %1884 = vmatprep.subr.mxu0 0.0
        %1885 = vmatpush1.msra.mxu0 0.0
        %1886 = vmatprep.subr.mxu0 0.0
        %1887 = vmatpush1.msra.mxu0 0.0
        %1888 = vmatprep.subr.mxu0 0.0
        %1889 = vmatpush1.msra.mxu0 0.0
        %1890 = vmatprep.subr.mxu0 0.0
        %1891 = vmatpush1.msra.mxu0 0.0
        %1892 = vmatprep.subr.mxu0 0.0
        %1893 = vmatpush1.msra.mxu0 0.0
        %1894 = vmatprep.subr.mxu0 0.0
        %1895 = vmatpush1.msra.mxu0 0.0
        %1896 = vmatprep.subr.mxu0 0.0
        %1897 = vmatpush1.msra.mxu0 0.0
        %1898 = vmatprep.subr.mxu0 0.0
        %1899 = vmatpush1.msra.mxu0 0.0
        %1900 = vmatprep.subr.mxu0 0.0
        %1901 = vmatpush1.msra.mxu0 0.0
        %1902 = vmatprep.mubr.f32.mxu0 0.0
        %1903 = vmatmul.mubr.f32.gmra.mrb[0].mxu0 %v1829
        %v1904 = vpop.f32.mrb[0].mxu0
        %v1905 = vadd.f32 0.0, %v1904
        %v1906 = vpop.f32.mrb[0].mxu0
        %1907 = vmatprep.mubr.f32.mxu0 0.0
        %1908 = vmatmul.mubr.f32.gmra.mrb[0].mxu0 %v1831
        %v1909 = vpop.f32.mrb[0].mxu0
        %v1910 = vadd.f32 0.0, %v1909
        %v1911 = vpop.f32.mrb[0].mxu0
        %1912 = vmatprep.mubr.f32.mxu0 0.0
        %1913 = vmatmul.mubr.f32.gmra.mrb[0].mxu0 %v1833
        %v1914 = vpop.f32.mrb[0].mxu0
        %v1915 = vadd.f32 0.0, %v1914
        %v1916 = vpop.f32.mrb[0].mxu0
        %1917 = vmatprep.mubr.f32.mxu0 0.0
        %1918 = vmatmul.mubr.f32.gmra.mrb[0].mxu0 %v1836
        %v1919 = vpop.f32.mrb[0].mxu0
        %v1920 = vadd.f32 0.0, %v1919
        %v1921 = vpop.f32.mrb[0].mxu0
        %1922 = vdwg.mxu0
        %1923 = vmatprep.subr.mxu0 0.0
        %1924 = vmatpush1.msra.mxu0 %v1812
        %1925 = vmatprep.subr.mxu0 0.0
        %1926 = vmatpush1.msra.mxu0 %v1813
        %1927 = vmatprep.subr.mxu0 0.0
        %1928 = vmatpush1.msra.mxu0 %v1814
        %1929 = vmatprep.subr.mxu0 0.0
        %1930 = vmatpush1.msra.mxu0 %v1815
        %1931 = vmatprep.subr.mxu0 0.0
        %1932 = vmatpush1.msra.mxu0 %v1816
        %1933 = vmatprep.subr.mxu0 0.0
        %1934 = vmatpush1.msra.mxu0 %v1817
        %1935 = vmatprep.subr.mxu0 0.0
        %1936 = vmatpush1.msra.mxu0 %v1818
        %1937 = vmatprep.subr.mxu0 0.0
        %1938 = vmatpush1.msra.mxu0 %v1819
        %1939 = vmatprep.subr.mxu0 0.0
        %1940 = vmatpush1.msra.mxu0 0.0
        %1941 = vmatprep.subr.mxu0 0.0
        %1942 = vmatpush1.msra.mxu0 0.0
        %1943 = vmatprep.subr.mxu0 0.0
        %1944 = vmatpush1.msra.mxu0 0.0
        %1945 = vmatprep.subr.mxu0 0.0
        %1946 = vmatpush1.msra.mxu0 0.0
        %1947 = vmatprep.subr.mxu0 0.0
        %1948 = vmatpush1.msra.mxu0 0.0
        %1949 = vmatprep.subr.mxu0 0.0
        %1950 = vmatpush1.msra.mxu0 0.0
        %1951 = vmatprep.subr.mxu0 0.0
        %1952 = vmatpush1.msra.mxu0 0.0
        %1953 = vmatprep.subr.mxu0 0.0
        %1954 = vmatpush1.msra.mxu0 0.0
        %1955 = vmatprep.subr.mxu0 0.0
        %1956 = vmatpush1.msra.mxu0 0.0
        %1957 = vmatprep.subr.mxu0 0.0
        %1958 = vmatpush1.msra.mxu0 0.0
        %1959 = vmatprep.subr.mxu0 0.0
        %1960 = vmatpush1.msra.mxu0 0.0
        %1961 = vmatprep.subr.mxu0 0.0
        %1962 = vmatpush1.msra.mxu0 0.0
        %1963 = vmatprep.subr.mxu0 0.0
        %1964 = vmatpush1.msra.mxu0 0.0
        %1965 = vmatprep.subr.mxu0 0.0
        %1966 = vmatpush1.msra.mxu0 0.0
        %1967 = vmatprep.subr.mxu0 0.0
        %1968 = vmatpush1.msra.mxu0 0.0
        %1969 = vmatprep.subr.mxu0 0.0
        %1970 = vmatpush1.msra.mxu0 0.0
        %1971 = vmatprep.subr.mxu0 0.0
        %1972 = vmatpush1.msra.mxu0 0.0
        %1973 = vmatprep.subr.mxu0 0.0
        %1974 = vmatpush1.msra.mxu0 0.0
        %1975 = vmatprep.subr.mxu0 0.0
        %1976 = vmatpush1.msra.mxu0 0.0
        %1977 = vmatprep.subr.mxu0 0.0
        %1978 = vmatpush1.msra.mxu0 0.0
        %1979 = vmatprep.subr.mxu0 0.0
        %1980 = vmatpush1.msra.mxu0 0.0
        %1981 = vmatprep.subr.mxu0 0.0
        %1982 = vmatpush1.msra.mxu0 0.0
        %1983 = vmatprep.subr.mxu0 0.0
        %1984 = vmatpush1.msra.mxu0 0.0
        %1985 = vmatprep.subr.mxu0 0.0
        %1986 = vmatpush1.msra.mxu0 0.0
        %1987 = vmatprep.mubr.f32.mxu0 0.0
        %1988 = vmatmul.mubr.f32.gmra.mrb[0].mxu0 %v1614
        %v1989 = vpop.f32.mrb[0].mxu0
        %v1990 = vadd.f32 %v1905, %v1989
        %v1991 = vpop.f32.mrb[0].mxu0
        %1992 = vmatprep.mubr.f32.mxu0 0.0
        %1993 = vmatmul.mubr.f32.gmra.mrb[0].mxu0 %v1616
        %v1994 = vpop.f32.mrb[0].mxu0
        %v1995 = vadd.f32 %v1910, %v1994
        %v1996 = vpop.f32.mrb[0].mxu0
        %1997 = vmatprep.mubr.f32.mxu0 0.0
        %1998 = vmatmul.mubr.f32.gmra.mrb[0].mxu0 %v1618
        %v1999 = vpop.f32.mrb[0].mxu0
        %v2000 = vadd.f32 %v1915, %v1999
        %v2001 = vpop.f32.mrb[0].mxu0
        %2002 = vmatprep.mubr.f32.mxu0 0.0
        %2003 = vmatmul.mubr.f32.gmra.mrb[0].mxu0 %v1620
        %v2004 = vpop.f32.mrb[0].mxu0
        %v2005 = vadd.f32 %v1920, %v2004
        %v2006 = vpop.f32.mrb[0].mxu0
        %2007 = vdwg.mxu0
        %v2008 = vadd.f32 %v1990, %v1806
        %v2009 = vadd.f32 %v1995, %v1806
        %v2010 = vadd.f32 %v2000, %v1806
        %v2011 = vadd.f32 %v2005, %v1806
        %v2012 = vtanh.pop %v1808
        %v2013 = vtanh.pop %v1809
        %v2014 = vtanh.pop %v1810
        %v2015 = vtanh.pop %v1811
        %v2016 = vtanh.pop %v2008
        %v2017 = vtanh.pop %v2009
        %v2018 = vtanh.pop %v2010
        %v2019 = vtanh.pop %v2011
        %v2020 = vadd.s32 %v770, 32
        %v2021 = vadd.s32 %v770, 40
        %v2022 = vadd.s32 %v770, 48
        %v2023 = vadd.s32 %v770, 56
        %v2024 = vsub.s32 %v2020, %v774
        %v2025 = vsub.s32 %v2021, %v774
        %v2026 = vsub.s32 %v2022, %v774
        %v2027 = vsub.s32 %v2023, %v774
        %vm2028 = vcmp.eq.s32.totalorder %v2024, 0
        %vm2029 = vcmp.eq.s32.totalorder %v2025, 0
        %vm2030 = vcmp.eq.s32.totalorder %v2026, 0
        %vm2031 = vcmp.eq.s32.totalorder %v2027, 0
        %v2032 = vsel %vm2028, 1.0, 0.0
        %v2033 = vsel %vm2029, 1.0, 0.0
        %v2034 = vsel %vm2030, 1.0, 0.0
        %v2035 = vsel %vm2031, 1.0, 0.0
        %vm2036 = vcmp.eq.s32.totalorder %v2024, 1
        %vm2037 = vcmp.eq.s32.totalorder %v2025, 1
        %vm2038 = vcmp.eq.s32.totalorder %v2026, 1
        %vm2039 = vcmp.eq.s32.totalorder %v2027, 1
        %v2040 = vsel %vm2036, 1.0, 0.0
        %v2041 = vsel %vm2037, 1.0, 0.0
        %v2042 = vsel %vm2038, 1.0, 0.0
        %v2043 = vsel %vm2039, 1.0, 0.0
        %vm2044 = vcmask 261120
        %v2045 = vsel %vm2044, %v783, 0
        %v2047 = vsel %vm2044, %v784, 0
        %v2049 = vsel %vm2044, %v1373, 0
        %v2051 = vsel %vm2044, %v1374, 0
        %v2054 = vsel %vm2044, %v2040, 0
        %v2057 = vsel %vm2044, %v2041, 0
        %v2060 = vsel %vm2044, %v2042, 0
        %v2063 = vsel %vm2044, %v2043, 0
        %2065 = vmatprep.subr.mxu0 0.0
        %2066 = vmatpush1.msra.mxu0 %v2016
        %2067 = vmatprep.subr.mxu0 0.0
        %2068 = vmatpush1.msra.mxu0 %v2017
        %2069 = vmatprep.subr.mxu0 0.0
        %2070 = vmatpush1.msra.mxu0 %v2018
        %2071 = vmatprep.subr.mxu0 0.0
        %2072 = vmatpush1.msra.mxu0 %v2019
        %2073 = vmatprep.subr.mxu0 0.0
        %2074 = vmatpush1.msra.mxu0 0.0
        %2075 = vmatprep.subr.mxu0 0.0
        %2076 = vmatpush1.msra.mxu0 0.0
        %2077 = vmatprep.subr.mxu0 0.0
        %2078 = vmatpush1.msra.mxu0 0.0
        %2079 = vmatprep.subr.mxu0 0.0
        %2080 = vmatpush1.msra.mxu0 0.0
        %2081 = vmatprep.subr.mxu0 0.0
        %2082 = vmatpush1.msra.mxu0 0.0
        %2083 = vmatprep.subr.mxu0 0.0
        %2084 = vmatpush1.msra.mxu0 0.0
        %2085 = vmatprep.subr.mxu0 0.0
        %2086 = vmatpush1.msra.mxu0 0.0
        %2087 = vmatprep.subr.mxu0 0.0
        %2088 = vmatpush1.msra.mxu0 0.0
        %2089 = vmatprep.subr.mxu0 0.0
        %2090 = vmatpush1.msra.mxu0 0.0
        %2091 = vmatprep.subr.mxu0 0.0
        %2092 = vmatpush1.msra.mxu0 0.0
        %2093 = vmatprep.subr.mxu0 0.0
        %2094 = vmatpush1.msra.mxu0 0.0
        %2095 = vmatprep.subr.mxu0 0.0
        %2096 = vmatpush1.msra.mxu0 0.0
        %2097 = vmatprep.subr.mxu0 0.0
        %2098 = vmatpush1.msra.mxu0 0.0
        %2099 = vmatprep.subr.mxu0 0.0
        %2100 = vmatpush1.msra.mxu0 0.0
        %2101 = vmatprep.subr.mxu0 0.0
        %2102 = vmatpush1.msra.mxu0 0.0
        %2103 = vmatprep.subr.mxu0 0.0
        %2104 = vmatpush1.msra.mxu0 0.0
        %2105 = vmatprep.subr.mxu0 0.0
        %2106 = vmatpush1.msra.mxu0 0.0
        %2107 = vmatprep.subr.mxu0 0.0
        %2108 = vmatpush1.msra.mxu0 0.0
        %2109 = vmatprep.subr.mxu0 0.0
        %2110 = vmatpush1.msra.mxu0 0.0
        %2111 = vmatprep.subr.mxu0 0.0
        %2112 = vmatpush1.msra.mxu0 0.0
        %2113 = vmatprep.subr.mxu0 0.0
        %2114 = vmatpush1.msra.mxu0 0.0
        %2115 = vmatprep.subr.mxu0 0.0
        %2116 = vmatpush1.msra.mxu0 0.0
        %2117 = vmatprep.subr.mxu0 0.0
        %2118 = vmatpush1.msra.mxu0 0.0
        %2119 = vmatprep.subr.mxu0 0.0
        %2120 = vmatpush1.msra.mxu0 0.0
        %2121 = vmatprep.subr.mxu0 0.0
        %2122 = vmatpush1.msra.mxu0 0.0
        %2123 = vmatprep.subr.mxu0 0.0
        %2124 = vmatpush1.msra.mxu0 0.0
        %2125 = vmatprep.subr.mxu0 0.0
        %2126 = vmatpush1.msra.mxu0 0.0
        %2127 = vmatprep.subr.mxu0 0.0
        %2128 = vmatpush1.msra.mxu0 0.0
        %2129 = vmatprep.mubr.f32.mxu0 0.0
        %2130 = vmatmul.mubr.f32.gmra.mrb[0].mxu0 %v2045
        %v2131 = vpop.f32.mrb[0].mxu0
        %v2132 = vadd.f32 0.0, %v2131
        %v2133 = vpop.f32.mrb[0].mxu0
        %2134 = vmatprep.mubr.f32.mxu0 0.0
        %2135 = vmatmul.mubr.f32.gmra.mrb[0].mxu0 %v2047
        %v2136 = vpop.f32.mrb[0].mxu0
        %v2137 = vadd.f32 0.0, %v2136
        %v2138 = vpop.f32.mrb[0].mxu0
        %2139 = vmatprep.mubr.f32.mxu0 0.0
        %2140 = vmatmul.mubr.f32.gmra.mrb[0].mxu0 %v2049
        %v2141 = vpop.f32.mrb[0].mxu0
        %v2142 = vadd.f32 0.0, %v2141
        %v2143 = vpop.f32.mrb[0].mxu0
        %2144 = vmatprep.mubr.f32.mxu0 0.0
        %2145 = vmatmul.mubr.f32.gmra.mrb[0].mxu0 %v2051
        %v2146 = vpop.f32.mrb[0].mxu0
        %v2147 = vadd.f32 0.0, %v2146
        %v2148 = vpop.f32.mrb[0].mxu0
        %2149 = vmatprep.mubr.f32.mxu0 0.0
        %2150 = vmatmul.mubr.f32.gmra.mrb[0].mxu0 %v2054
        %v2151 = vpop.f32.mrb[0].mxu0
        %v2152 = vadd.f32 0.0, %v2151
        %v2153 = vpop.f32.mrb[0].mxu0
        %2154 = vmatprep.mubr.f32.mxu0 0.0
        %2155 = vmatmul.mubr.f32.gmra.mrb[0].mxu0 %v2057
        %v2156 = vpop.f32.mrb[0].mxu0
        %v2157 = vadd.f32 0.0, %v2156
        %v2158 = vpop.f32.mrb[0].mxu0
        %2159 = vmatprep.mubr.f32.mxu0 0.0
        %2160 = vmatmul.mubr.f32.gmra.mrb[0].mxu0 %v2060
        %v2161 = vpop.f32.mrb[0].mxu0
        %v2162 = vadd.f32 0.0, %v2161
        %v2163 = vpop.f32.mrb[0].mxu0
        %2164 = vmatprep.mubr.f32.mxu0 0.0
        %2165 = vmatmul.mubr.f32.gmra.mrb[0].mxu0 %v2063
        %v2166 = vpop.f32.mrb[0].mxu0
        %v2167 = vadd.f32 0.0, %v2166
        %v2168 = vpop.f32.mrb[0].mxu0
        %2169 = vdwg.mxu0
        %v2170 = vsel %vm2044, %v779, 0
        %v2172 = vsel %vm2044, %v780, 0
        %v2174 = vsel %vm2044, %v1369, 0
        %v2176 = vsel %vm2044, %v1370, 0
        %v2179 = vsel %vm2044, %v2032, 0
        %v2182 = vsel %vm2044, %v2033, 0
        %v2185 = vsel %vm2044, %v2034, 0
        %v2188 = vsel %vm2044, %v2035, 0
        %2190 = vmatprep.subr.mxu0 0.0
        %2191 = vmatpush1.msra.mxu0 %v2012
        %2192 = vmatprep.subr.mxu0 0.0
        %2193 = vmatpush1.msra.mxu0 %v2013
        %2194 = vmatprep.subr.mxu0 0.0
        %2195 = vmatpush1.msra.mxu0 %v2014
        %2196 = vmatprep.subr.mxu0 0.0
        %2197 = vmatpush1.msra.mxu0 %v2015
        %2198 = vmatprep.subr.mxu0 0.0
        %2199 = vmatpush1.msra.mxu0 0.0
        %2200 = vmatprep.subr.mxu0 0.0
        %2201 = vmatpush1.msra.mxu0 0.0
        %2202 = vmatprep.subr.mxu0 0.0
        %2203 = vmatpush1.msra.mxu0 0.0
        %2204 = vmatprep.subr.mxu0 0.0
        %2205 = vmatpush1.msra.mxu0 0.0
        %2206 = vmatprep.subr.mxu0 0.0
        %2207 = vmatpush1.msra.mxu0 0.0
        %2208 = vmatprep.subr.mxu0 0.0
        %2209 = vmatpush1.msra.mxu0 0.0
        %2210 = vmatprep.subr.mxu0 0.0
        %2211 = vmatpush1.msra.mxu0 0.0
        %2212 = vmatprep.subr.mxu0 0.0
        %2213 = vmatpush1.msra.mxu0 0.0
        %2214 = vmatprep.subr.mxu0 0.0
        %2215 = vmatpush1.msra.mxu0 0.0
        %2216 = vmatprep.subr.mxu0 0.0
        %2217 = vmatpush1.msra.mxu0 0.0
        %2218 = vmatprep.subr.mxu0 0.0
        %2219 = vmatpush1.msra.mxu0 0.0
        %2220 = vmatprep.subr.mxu0 0.0
        %2221 = vmatpush1.msra.mxu0 0.0
        %2222 = vmatprep.subr.mxu0 0.0
        %2223 = vmatpush1.msra.mxu0 0.0
        %2224 = vmatprep.subr.mxu0 0.0
        %2225 = vmatpush1.msra.mxu0 0.0
        %2226 = vmatprep.subr.mxu0 0.0
        %2227 = vmatpush1.msra.mxu0 0.0
        %2228 = vmatprep.subr.mxu0 0.0
        %2229 = vmatpush1.msra.mxu0 0.0
        %2230 = vmatprep.subr.mxu0 0.0
        %2231 = vmatpush1.msra.mxu0 0.0
        %2232 = vmatprep.subr.mxu0 0.0
        %2233 = vmatpush1.msra.mxu0 0.0
        %2234 = vmatprep.subr.mxu0 0.0
        %2235 = vmatpush1.msra.mxu0 0.0
        %2236 = vmatprep.subr.mxu0 0.0
        %2237 = vmatpush1.msra.mxu0 0.0
        %2238 = vmatprep.subr.mxu0 0.0
        %2239 = vmatpush1.msra.mxu0 0.0
        %2240 = vmatprep.subr.mxu0 0.0
        %2241 = vmatpush1.msra.mxu0 0.0
        %2242 = vmatprep.subr.mxu0 0.0
        %2243 = vmatpush1.msra.mxu0 0.0
        %2244 = vmatprep.subr.mxu0 0.0
        %2245 = vmatpush1.msra.mxu0 0.0
        %2246 = vmatprep.subr.mxu0 0.0
        %2247 = vmatpush1.msra.mxu0 0.0
        %2248 = vmatprep.subr.mxu0 0.0
        %2249 = vmatpush1.msra.mxu0 0.0
        %2250 = vmatprep.subr.mxu0 0.0
        %2251 = vmatpush1.msra.mxu0 0.0
        %2252 = vmatprep.subr.mxu0 0.0
        %2253 = vmatpush1.msra.mxu0 0.0
        %2254 = vmatprep.mubr.f32.mxu0 0.0
        %2255 = vmatmul.mubr.f32.gmra.mrb[0].mxu0 %v2170
        %v2256 = vpop.f32.mrb[0].mxu0
        %v2257 = vadd.f32 %v2132, %v2256
        %v2258 = vpop.f32.mrb[0].mxu0
        %2259 = vmatprep.mubr.f32.mxu0 0.0
        %2260 = vmatmul.mubr.f32.gmra.mrb[0].mxu0 %v2172
        %v2261 = vpop.f32.mrb[0].mxu0
        %v2262 = vadd.f32 %v2137, %v2261
        %v2263 = vpop.f32.mrb[0].mxu0
        %2264 = vmatprep.mubr.f32.mxu0 0.0
        %2265 = vmatmul.mubr.f32.gmra.mrb[0].mxu0 %v2174
        %v2266 = vpop.f32.mrb[0].mxu0
        %v2267 = vadd.f32 %v2142, %v2266
        %v2268 = vpop.f32.mrb[0].mxu0
        %2269 = vmatprep.mubr.f32.mxu0 0.0
        %2270 = vmatmul.mubr.f32.gmra.mrb[0].mxu0 %v2176
        %v2271 = vpop.f32.mrb[0].mxu0
        %v2272 = vadd.f32 %v2147, %v2271
        %v2273 = vpop.f32.mrb[0].mxu0
        %2274 = vmatprep.mubr.f32.mxu0 0.0
        %2275 = vmatmul.mubr.f32.gmra.mrb[0].mxu0 %v2179
        %v2276 = vpop.f32.mrb[0].mxu0
        %v2277 = vadd.f32 %v2152, %v2276
        %v2278 = vpop.f32.mrb[0].mxu0
        %2279 = vmatprep.mubr.f32.mxu0 0.0
        %2280 = vmatmul.mubr.f32.gmra.mrb[0].mxu0 %v2182
        %v2281 = vpop.f32.mrb[0].mxu0
        %v2282 = vadd.f32 %v2157, %v2281
        %v2283 = vpop.f32.mrb[0].mxu0
        %2284 = vmatprep.mubr.f32.mxu0 0.0
        %2285 = vmatmul.mubr.f32.gmra.mrb[0].mxu0 %v2185
        %v2286 = vpop.f32.mrb[0].mxu0
        %v2287 = vadd.f32 %v2162, %v2286
        %v2288 = vpop.f32.mrb[0].mxu0
        %2289 = vmatprep.mubr.f32.mxu0 0.0
        %2290 = vmatmul.mubr.f32.gmra.mrb[0].mxu0 %v2188
        %v2291 = vpop.f32.mrb[0].mxu0
        %v2292 = vadd.f32 %v2167, %v2291
        %v2293 = vpop.f32.mrb[0].mxu0
        %2294 = vdwg.mxu0
        %vm2295 = vcmask 515072
        %2296 = vst.msk [vmem:[%s293] sm:$0xff] %vm2295, %v2257
        %2297 = vst.msk [vmem:[%s293 + $0x8] sm:$0xff] %vm2295, %v2262
        %2298 = vst.msk [vmem:[%s293 + $0x10] sm:$0xff] %vm2295, %v2267
        %2299 = vst.msk [vmem:[%s293 + $0x18] sm:$0xff] %vm2295, %v2272
        %2300 = vst.msk [vmem:[%s293 + $0x20] sm:$0xff] %vm2295, %v2277
        %2301 = vst.msk [vmem:[%s293 + $0x28] sm:$0xff] %vm2295, %v2282
        %2302 = vst.msk [vmem:[%s293 + $0x30] sm:$0xff] %vm2295, %v2287
        %2303 = vst.msk [vmem:[%s293 + $0x38] sm:$0xff] %vm2295, %v2292
        %p2304 = scmp.lt.s32.totalorder %s19, 1
        %s2305 = scalar_select %p2304, %s19, 1
        %s2306 = smul.addr %s2305, 8
        %s2307 = smul.addr %s2306, 8
        %s2308 = scalar_lea.vmem %s7, %s2307
        // Predicated region
        $region53: #{decoder_forward.1} parent=47 // pred_check
          %p2309 = pneg %p189
        $region54: #{decoder_forward.1} parent=47 // pred_check_branch
          %2311 = sbr.rel (%p2309) target = $region56
        $region55: #{decoder_forward.1} parent=47 // pred_region
          _
        $region56: #{decoder_forward.1} parent=47 // pred_fallthru
          _
      $region48: #{decoder_forward.1} parent=5 // pred_fallthru
        _
      %p2312 = scmp.le.s32.totalorder 2, %s14
      // Predicated region
      $region57: #{decoder_forward.1} parent=5 // pred_check
        %p2313 = pneg %p2312
      $region58: #{decoder_forward.1} parent=5 // pred_check_branch
        %2315 = sbr.rel (%p2313) target = $region60
      $region59: #{decoder_forward.1} parent=5 // pred_region
        %s2316 = ssub.s32 %s14, 2
        // Predicated region
        $region61: #{decoder_forward.1} parent=59 // pred_check
          %p2317 = pneg %p195
        $region62: #{decoder_forward.1} parent=59 // pred_check_branch
          %2319 = sbr.rel (%p2317) target = $region64
        $region63: #{decoder_forward.1} parent=59 // pred_region
          %p2320 = scmp.lt.s32.totalorder %s20, 1
          %s2321 = scalar_select %p2320, %s20, 1
          %s2322 = smul.addr %s2321, 8
          %s2323 = smul.addr %s2322, 8
          %s2324 = scalar_lea.vmem %s7, %s2323
        $region64: #{decoder_forward.1} parent=59 // pred_fallthru
          _
      $region60: #{decoder_forward.1} parent=5 // pred_fallthru
        _
    $region6: #{decoder_forward.1} parent=1 // loop_footer
      %s18 = sadd.s32 1, %s14
    $region7: #{decoder_forward.1} parent=1 // loop_footer_branch
      %13 = sbr.rel target = $region3
    $region8: #{decoder_forward.1} parent=1 // loop_exit
      _
    %2325 = vsyncpa [#allocation3], 1
    %s2326 = scalar_lea.sflag [#allocation3], 1
    %2327 = vsyncpa %s2326, 1

</llo_original>
